<compile_context>
chip_gen: v7x
topology: tpu7x:2x2x1
jax: 0.10.0
libtpu: 0.0.40
codegen_flags: <defaults>
</compile_context>

<pallas_src>
import functools

import jax
import jax.numpy as jnp
from jax.experimental import pallas as pl
from jax.experimental.pallas import tpu as pltpu


def _round_up(x, m):
    return (x + m - 1) // m * m


def _cdiv(a, b):
    return (a + b - 1) // b


# ---------------------------------------------------------------------------
# Kernel 1: batched input projection  XW = x @ Wx_fused + b  (one big GEMM,
# covers every timestep; completely off the serial recurrence path).
# ---------------------------------------------------------------------------
def _proj_kernel(x_ref, wx_ref, b_ref, out_ref):
    # x: (tile_rows, I) bf16, wx: (I, 4*Hp) bf16, b: (1, 4*Hp) f32 -> out f32
    out_ref[...] = (
        jnp.dot(x_ref[...], wx_ref[...], preferred_element_type=jnp.float32)
        + b_ref[...]
    )


# ---------------------------------------------------------------------------
# Kernel 2: the recurrence.  grid = (batch_blocks ["parallel"],
# time_chunks ["arbitrary"]); each grid step runs `time_block` LSTM steps with
# h/c resident in VMEM scratch and a single fused (Hp, 4*Hp) recurrent matmul
# per step.
# ---------------------------------------------------------------------------
def _lstm_recurrent_kernel(xw_ref, wh_ref, h_out_ref, h_scr, c_scr, *,
                           seq_len, time_block, hidden_p):
    tc = pl.program_id(1)            # time-chunk index (inner, sequential)

    @pl.when(tc == 0)
    def _init():
        h_scr[...] = jnp.zeros_like(h_scr)
        c_scr[...] = jnp.zeros_like(c_scr)

    wh = wh_ref[...]                 # (Hp, 4*Hp) bf16, resident for the chunk
    Hp = hidden_p
    full_chunks = (seq_len % time_block) == 0

    # Statically unrolled loop over the timesteps of this chunk (time_block is
    # small). For very large chunks switch to lax.fori_loop(..., unroll=True).
    for tt in range(time_block):
        h = h_scr[...]               # (Bb, Hp) f32
        c = c_scr[...]

        # One fused recurrent matmul: (Bb,Hp)bf16 x (Hp,4Hp)bf16 -> (Bb,4Hp)f32,
        # added to the precomputed input-path pre-activations (bias included).
        gates = xw_ref[tt] + jnp.dot(
            h.astype(jnp.bfloat16), wh, preferred_element_type=jnp.float32)

        f = jax.nn.sigmoid(gates[:, 0 * Hp:1 * Hp])
        i = jax.nn.sigmoid(gates[:, 1 * Hp:2 * Hp])
        o = jax.nn.sigmoid(gates[:, 2 * Hp:3 * Hp])
        Cg = jnp.tanh(gates[:, 3 * Hp:4 * Hp])

        c_new = f * c + i * Cg
        h_new = o * jnp.tanh(c_new)

        if full_chunks:
            c_scr[...] = c_new
            h_scr[...] = h_new
        else:
            # Mask the padded tail steps of the final chunk.
            valid = tc * time_block + tt < seq_len
            c_scr[...] = jnp.where(valid, c_new, c)
            h_scr[...] = jnp.where(valid, h_new, h)

    @pl.when(tc == pl.num_programs(1) - 1)
    def _finalize():
        h_out_ref[...] = h_scr[...]


# ---------------------------------------------------------------------------
# Wrapper
# ---------------------------------------------------------------------------
def _fuse_and_pad_params(params, input_size, hidden_size, hidden_p):
    """Stack the 4 gate weights into (I,4Hp)/(Hp,4Hp)/(1,4Hp); each gate gets a
    lane-aligned Hp-wide column block, zero padded."""
    I, H, Hp = input_size, hidden_size, hidden_p
    G4 = 4 * Hp
    wx = jnp.zeros((I, G4), jnp.float32)
    wh = jnp.zeros((Hp, G4), jnp.float32)
    b = jnp.zeros((1, G4), jnp.float32)
    for g, name in enumerate(("f", "i", "o", "c")):
        wx = wx.at[:, g * Hp:g * Hp + H].set(params[f"wx{name}"])
        wh = wh.at[:H, g * Hp:g * Hp + H].set(params[f"wh{name}"])
        b = b.at[:, g * Hp:g * Hp + H].set(params[f"b{name}"])
    return wx.astype(jnp.bfloat16), wh.astype(jnp.bfloat16), b


def lstm_forward(inputs, params, *, hidden_size, time_block=8, batch_block=None):
    """inputs: (B, T, I) f32 (torch layout).  Returns final hidden state (B, H)."""
    B, T, I = inputs.shape
    H = hidden_size
    Hp = _round_up(H, 128)      # lane-dense hidden (128 lanes)
    Bp = _round_up(B, 8)        # sublane-dense batch (8 sublanes)
    G4 = 4 * Hp

    if batch_block is None:
        # v7x: pass batch_block = Bp // 2 (kept a multiple of 8) to split the
        # batch recurrence across the two TensorCores.
        batch_block = Bp
    assert batch_block % 8 == 0 and Bp % batch_block == 0

    wx_bf, wh_bf, b_f32 = _fuse_and_pad_params(params, I, H, Hp)

    # ---- input projection over ALL timesteps: one MXU-shaped GEMM -----------
    x_tbi = jnp.transpose(inputs, (1, 0, 2))                 # (T, B, I)
    x_tbi = jnp.pad(x_tbi, ((0, 0), (0, Bp - B), (0, 0)))    # (T, Bp, I)
    rows = T * Bp                                            # multiple of 8
    x2d = x_tbi.reshape(rows, I).astype(jnp.bfloat16)

    tile_rows = min(512, rows)
    rows_p = _round_up(rows, tile_rows)
    x2d = jnp.pad(x2d, ((0, rows_p - rows), (0, 0)))

    xw2d = pl.pallas_call(
        _proj_kernel,
        out_shape=jax.ShapeDtypeStruct((rows_p, G4), jnp.float32),
        grid_spec=pltpu.PrefetchScalarGridSpec(
            num_scalar_prefetch=0,
            grid=(rows_p // tile_rows,),
            in_specs=[
                pl.BlockSpec((tile_rows, I), lambda r: (r, 0)),
                pl.BlockSpec((I, G4), lambda r: (0, 0)),
                pl.BlockSpec((1, G4), lambda r: (0, 0)),
            ],
            out_specs=pl.BlockSpec((tile_rows, G4), lambda r: (r, 0)),
        ),
        compiler_params=pltpu.CompilerParams(
            dimension_semantics=("parallel",)),
    )(x2d, wx_bf, b_f32)

    # (T, Bp, 4*Hp) input-path gate pre-activations (bias already added).
    xw = xw2d[:rows].reshape(T, Bp, G4)

    # ---- recurrence ----------------------------------------------------------
    n_chunks = _cdiv(T, time_block)
    Tp = n_chunks * time_block
    if Tp != T:
        xw = jnp.pad(xw, ((0, Tp - T), (0, 0), (0, 0)))      # tail masked in-kernel
    nb = Bp // batch_block

    kernel = functools.partial(
        _lstm_recurrent_kernel,
        seq_len=T, time_block=time_block, hidden_p=Hp)

    h_final = pl.pallas_call(
        kernel,
        out_shape=jax.ShapeDtypeStruct((Bp, Hp), jnp.float32),
        grid_spec=pltpu.PrefetchScalarGridSpec(
            num_scalar_prefetch=0,
            grid=(nb, n_chunks),
            in_specs=[
                # (time_block, Bb, 4Hp) chunk of precomputed gate inputs.
                pl.BlockSpec((time_block, batch_block, G4),
                             lambda bb, tc: (tc, bb, 0)),
                # Recurrent weights: grid-invariant index_map, DMA'd once and
                # kept resident.  At realistic H, single-buffer this spec
                # (pipeline_mode=pl.Buffered(1)) to halve its VMEM footprint.
                pl.BlockSpec((Hp, G4), lambda bb, tc: (0, 0)),
            ],
            out_specs=pl.BlockSpec((batch_block, Hp), lambda bb, tc: (bb, 0)),
            scratch_shapes=[
                pltpu.VMEM((batch_block, Hp), jnp.float32),   # hidden state
                pltpu.VMEM((batch_block, Hp), jnp.float32),   # cell state
            ],
        ),
        compiler_params=pltpu.CompilerParams(
            dimension_semantics=("parallel", "arbitrary")),
    )(xw, wh_bf)

    return h_final[:B, :H]


# ---------------------------------------------------------------------------
# Pure-JAX reference (PyTorch step loop), using the same bf16 weight/activation
# rounding as the kernel (f32 accumulation and f32 state), so the comparison
# isolates kernel correctness rather than dtype policy.
# ---------------------------------------------------------------------------
def lstm_reference(inputs, params):
    B, T, _ = inputs.shape
    H = params["bf"].shape[-1]
    h = jnp.zeros((B, H), jnp.float32)
    c = jnp.zeros((B, H), jnp.float32)
    bf = jnp.bfloat16
    for t in range(T):
        x = inputs[:, t, :].astype(bf)
        hb = h.astype(bf)

        def gate(g):
            return (jnp.dot(x, params[f"wx{g}"].astype(bf),
                            preferred_element_type=jnp.float32)
                    + jnp.dot(hb, params[f"wh{g}"].astype(bf),
                              preferred_element_type=jnp.float32)
                    + params[f"b{g}"])

        f = jax.nn.sigmoid(gate("f"))
        i = jax.nn.sigmoid(gate("i"))
        o = jax.nn.sigmoid(gate("o"))
        C = jnp.tanh(gate("c"))
        c = f * c + i * C
        h = o * jnp.tanh(c)
    return h


def init_params(key, input_size, hidden_size):
    ks = jax.random.split(key, 12)

    def mk(k, shape, scale=0.1):
        return (scale * jax.random.normal(k, shape)).astype(jnp.float32)

    params = {}
    for gi, g in enumerate(("f", "i", "o", "c")):
        params[f"wx{g}"] = mk(ks[3 * gi + 0], (input_size, hidden_size))
        params[f"wh{g}"] = mk(ks[3 * gi + 1], (hidden_size, hidden_size))
        params[f"b{g}"] = mk(ks[3 * gi + 2], (1, hidden_size))
    return params


if __name__ == "__main__":
    B, T, I, H = 4, 8, 16, 32   # batch, time, input_size, hidden(=cell)_size
    key = jax.random.PRNGKey(0)
    k_x, k_p = jax.random.split(key)
    x = jax.random.normal(k_x, (B, T, I), dtype=jnp.float32)
    params = init_params(k_p, I, H)

    fwd = jax.jit(functools.partial(lstm_forward, hidden_size=H, time_block=8))
    out = jax.block_until_ready(fwd(x, params))
    ref = lstm_reference(x, params)

    assert out.shape == (B, H)
    err = jnp.max(jnp.abs(out - ref))
    assert jnp.allclose(out, ref, atol=1e-4, rtol=1e-4), f"mismatch vs reference (max abs err {err})"
    print("KERNEL_OK")
</pallas_src>

<mosaic_0001>
module attributes {stable_mosaic.version = 11 : i64} {
  func.func @_proj_kernel(%arg0: i32, %arg1: memref<64x16xbf16, #tpu.memory_space<vmem>>, %arg2: memref<16x512xbf16, #tpu.memory_space<vmem>>, %arg3: memref<1x512xf32, #tpu.memory_space<vmem>>, %arg4: memref<64x512xf32, #tpu.memory_space<vmem>>) attributes {dimension_semantics = [#tpu.dimension_semantics<parallel>], iteration_bounds = array<i64: 1>, scalar_prefetch = 0 : i64, scratch_operands = 0 : i64, tpu.core_type = #tpu.core_type<tc>, window_params = [{transform_indices = @transform_0, window_bounds = array<i64: 64, 16>}, {pipeline_mode = #tpu.pipeline_mode<synchronous>, transform_indices = @transform_1, window_bounds = array<i64: 16, 512>}, {pipeline_mode = #tpu.pipeline_mode<synchronous>, transform_indices = @transform_2, window_bounds = array<i64: 1, 512>}, {transform_indices = @transform_3, window_bounds = array<i64: 64, 512>}]} {
    %c0 = arith.constant 0 : index
    %c0_0 = arith.constant 0 : index
    %0 = vector.load %arg1[%c0, %c0_0] : memref<64x16xbf16, #tpu.memory_space<vmem>>, vector<64x16xbf16>
    %c0_1 = arith.constant 0 : index
    %c0_2 = arith.constant 0 : index
    %1 = vector.load %arg2[%c0_1, %c0_2] : memref<16x512xbf16, #tpu.memory_space<vmem>>, vector<16x512xbf16>
    %cst = arith.constant dense<0.000000e+00> : vector<64x512xf32>
    %2 = tpu.matmul %0, %1, %cst {dimension_numbers = #tpu.dot_dimension_numbers<[1], [0], [0], [1], [0, 0, 1, 1], [], []>} : vector<64x16xbf16>, vector<16x512xbf16>, vector<64x512xf32> -> vector<64x512xf32>
    %c0_3 = arith.constant 0 : index
    %c0_4 = arith.constant 0 : index
    %3 = vector.load %arg3[%c0_3, %c0_4] : memref<1x512xf32, #tpu.memory_space<vmem>>, vector<1x512xf32>
    %4 = vector.broadcast %3 : vector<1x512xf32> to vector<64x512xf32>
    %5 = arith.addf %2, %4 : vector<64x512xf32>
    %c0_5 = arith.constant 0 : index
    %c0_6 = arith.constant 0 : index
    %6 = vector.load %arg4[%c0_5, %c0_6] : memref<64x512xf32, #tpu.memory_space<vmem>>, vector<64x512xf32>
    tpu.vector_store %arg4[%c0_5, %c0_6], %5 {strides = array<i32>} : memref<64x512xf32, #tpu.memory_space<vmem>>, vector<64x512xf32>,
    return
  }
  func.func @transform_0(%arg0: i32) -> (i32, i32) {
    %c0_i32 = arith.constant 0 : i32
    %c0_i32_0 = arith.constant 0 : i32
    return %arg0, %c0_i32 : i32, i32
  }
  func.func @transform_1(%arg0: i32) -> (i32, i32) {
    %c0_i32 = arith.constant 0 : i32
    %c0_i32_0 = arith.constant 0 : i32
    %c0_i32_1 = arith.constant 0 : i32
    return %c0_i32, %c0_i32_0 : i32, i32
  }
  func.func @transform_2(%arg0: i32) -> (i32, i32) {
    %c0_i32 = arith.constant 0 : i32
    %c0_i32_0 = arith.constant 0 : i32
    %c0_i32_1 = arith.constant 0 : i32
    return %c0_i32, %c0_i32_0 : i32, i32
  }
  func.func @transform_3(%arg0: i32) -> (i32, i32) {
    %c0_i32 = arith.constant 0 : i32
    %c0_i32_0 = arith.constant 0 : i32
    return %arg0, %c0_i32 : i32, i32
  }
}

module attributes {stable_mosaic.version = 11 : i64} {
  func.func @_lstm_recurrent_kernel(%arg0: i32, %arg1: i32, %arg2: memref<8x8x512xf32, #tpu.memory_space<vmem>>, %arg3: memref<128x512xbf16, #tpu.memory_space<vmem>>, %arg4: memref<8x128xf32, #tpu.memory_space<vmem>>, %arg5: memref<8x128xf32, #tpu.memory_space<vmem>>, %arg6: memref<8x128xf32, #tpu.memory_space<vmem>>) attributes {dimension_semantics = [#tpu.dimension_semantics<parallel>, #tpu.dimension_semantics<arbitrary>], iteration_bounds = array<i64: 1, 1>, scalar_prefetch = 0 : i64, scratch_operands = 2 : i64, tpu.core_type = #tpu.core_type<tc>, window_params = [{transform_indices = @transform_0, window_bounds = array<i64: 8, 8, 512>}, {pipeline_mode = #tpu.pipeline_mode<synchronous>, transform_indices = @transform_1, window_bounds = array<i64: 128, 512>}, {transform_indices = @transform_2, window_bounds = array<i64: 8, 128>}]} {
    %c0_i32 = arith.constant 0 : i32
    %0 = arith.cmpi eq, %arg1, %c0_i32 : i32
    %1 = arith.extui %0 : i1 to i32
    %c0_i32_0 = arith.constant 0 : i32
    %2 = arith.cmpi ne, %1, %c0_i32_0 : i32
    scf.if %2 {
      %cst_116 = arith.constant 0.000000e+00 : f32
      %279 = vector.broadcast %cst_116 : f32 to vector<8x128xf32>
      %c0_117 = arith.constant 0 : index
      %c0_118 = arith.constant 0 : index
      %280 = vector.load %arg5[%c0_117, %c0_118] : memref<8x128xf32, #tpu.memory_space<vmem>>, vector<8x128xf32>
      tpu.vector_store %arg5[%c0_117, %c0_118], %279 {strides = array<i32>} : memref<8x128xf32, #tpu.memory_space<vmem>>, vector<8x128xf32>,
      %cst_119 = arith.constant 0.000000e+00 : f32
      %281 = vector.broadcast %cst_119 : f32 to vector<8x128xf32>
      %c0_120 = arith.constant 0 : index
      %c0_121 = arith.constant 0 : index
      %282 = vector.load %arg6[%c0_120, %c0_121] : memref<8x128xf32, #tpu.memory_space<vmem>>, vector<8x128xf32>
      tpu.vector_store %arg6[%c0_120, %c0_121], %281 {strides = array<i32>} : memref<8x128xf32, #tpu.memory_space<vmem>>, vector<8x128xf32>,
    } else {
    }
    %c0 = arith.constant 0 : index
    %c0_1 = arith.constant 0 : index
    %3 = vector.load %arg3[%c0, %c0_1] : memref<128x512xbf16, #tpu.memory_space<vmem>>, vector<128x512xbf16>
    %c0_2 = arith.constant 0 : index
    %c0_3 = arith.constant 0 : index
    %4 = vector.load %arg5[%c0_2, %c0_3] : memref<8x128xf32, #tpu.memory_space<vmem>>, vector<8x128xf32>
    %c0_4 = arith.constant 0 : index
    %c0_5 = arith.constant 0 : index
    %5 = vector.load %arg6[%c0_4, %c0_5] : memref<8x128xf32, #tpu.memory_space<vmem>>, vector<8x128xf32>
    %c0_6 = arith.constant 0 : index
    %c0_7 = arith.constant 0 : index
    %c0_8 = arith.constant 0 : index
    %6 = vector.load %arg2[%c0_6, %c0_7, %c0_8] : memref<8x8x512xf32, #tpu.memory_space<vmem>>, vector<1x8x512xf32>
    %7 = vector.shape_cast %6 : vector<1x8x512xf32> to vector<8x512xf32>
    %8 = arith.truncf %4 : vector<8x128xf32> to vector<8x128xbf16>
    %cst = arith.constant dense<0.000000e+00> : vector<8x512xf32>
    %9 = tpu.matmul %8, %3, %cst {dimension_numbers = #tpu.dot_dimension_numbers<[1], [0], [0], [1], [0, 0, 1, 1], [], []>} : vector<8x128xbf16>, vector<128x512xbf16>, vector<8x512xf32> -> vector<8x512xf32>
    %10 = arith.addf %7, %9 : vector<8x512xf32>
    %11 = vector.extract_strided_slice %10 {offsets = [0, 0], sizes = [8, 128], strides = [1, 1]} : vector<8x512xf32> to vector<8x128xf32>
    %12 = arith.negf %11 : vector<8x128xf32>
    %13 = math.exp %12 : vector<8x128xf32>
    %cst_9 = arith.constant 1.000000e+00 : f32
    %14 = vector.broadcast %cst_9 : f32 to vector<8x128xf32>
    %15 = arith.addf %14, %13 : vector<8x128xf32>
    %16 = arith.divf %14, %15 : vector<8x128xf32>
    %17 = vector.extract_strided_slice %10 {offsets = [0, 128], sizes = [8, 128], strides = [1, 1]} : vector<8x512xf32> to vector<8x128xf32>
    %18 = arith.negf %17 : vector<8x128xf32>
    %19 = math.exp %18 : vector<8x128xf32>
    %cst_10 = arith.constant 1.000000e+00 : f32
    %20 = vector.broadcast %cst_10 : f32 to vector<8x128xf32>
    %21 = arith.addf %20, %19 : vector<8x128xf32>
    %22 = arith.divf %20, %21 : vector<8x128xf32>
    %23 = vector.extract_strided_slice %10 {offsets = [0, 256], sizes = [8, 128], strides = [1, 1]} : vector<8x512xf32> to vector<8x128xf32>
    %24 = arith.negf %23 : vector<8x128xf32>
    %25 = math.exp %24 : vector<8x128xf32>
    %cst_11 = arith.constant 1.000000e+00 : f32
    %26 = vector.broadcast %cst_11 : f32 to vector<8x128xf32>
    %27 = arith.addf %26, %25 : vector<8x128xf32>
    %28 = arith.divf %26, %27 : vector<8x128xf32>
    %29 = vector.extract_strided_slice %10 {offsets = [0, 384], sizes = [8, 128], strides = [1, 1]} : vector<8x512xf32> to vector<8x128xf32>
    %30 = math.tanh %29 : vector<8x128xf32>
    %31 = arith.mulf %16, %5 : vector<8x128xf32>
    %32 = arith.mulf %22, %30 : vector<8x128xf32>
    %33 = arith.addf %31, %32 : vector<8x128xf32>
    %34 = math.tanh %33 : vector<8x128xf32>
    %35 = arith.mulf %28, %34 : vector<8x128xf32>
    %c0_12 = arith.constant 0 : index
    %c0_13 = arith.constant 0 : index
    %36 = vector.load %arg6[%c0_12, %c0_13] : memref<8x128xf32, #tpu.memory_space<vmem>>, vector<8x128xf32>
    tpu.vector_store %arg6[%c0_12, %c0_13], %33 {strides = array<i32>} : memref<8x128xf32, #tpu.memory_space<vmem>>, vector<8x128xf32>,
    %c0_14 = arith.constant 0 : index
    %c0_15 = arith.constant 0 : index
    %37 = vector.load %arg5[%c0_14, %c0_15] : memref<8x128xf32, #tpu.memory_space<vmem>>, vector<8x128xf32>
    tpu.vector_store %arg5[%c0_14, %c0_15], %35 {strides = array<i32>} : memref<8x128xf32, #tpu.memory_space<vmem>>, vector<8x128xf32>,
    %c0_16 = arith.constant 0 : index
    %c0_17 = arith.constant 0 : index
    %38 = vector.load %arg5[%c0_16, %c0_17] : memref<8x128xf32, #tpu.memory_space<vmem>>, vector<8x128xf32>
    %c0_18 = arith.constant 0 : index
    %c0_19 = arith.constant 0 : index
    %39 = vector.load %arg6[%c0_18, %c0_19] : memref<8x128xf32, #tpu.memory_space<vmem>>, vector<8x128xf32>
    %c1 = arith.constant 1 : index
    %c0_20 = arith.constant 0 : index
    %c0_21 = arith.constant 0 : index
    %40 = vector.load %arg2[%c1, %c0_20, %c0_21] : memref<8x8x512xf32, #tpu.memory_space<vmem>>, vector<1x8x512xf32>
    %41 = vector.shape_cast %40 : vector<1x8x512xf32> to vector<8x512xf32>
    %42 = arith.truncf %38 : vector<8x128xf32> to vector<8x128xbf16>
    %cst_22 = arith.constant dense<0.000000e+00> : vector<8x512xf32>
    %43 = tpu.matmul %42, %3, %cst_22 {dimension_numbers = #tpu.dot_dimension_numbers<[1], [0], [0], [1], [0, 0, 1, 1], [], []>} : vector<8x128xbf16>, vector<128x512xbf16>, vector<8x512xf32> -> vector<8x512xf32>
    %44 = arith.addf %41, %43 : vector<8x512xf32>
    %45 = vector.extract_strided_slice %44 {offsets = [0, 0], sizes = [8, 128], strides = [1, 1]} : vector<8x512xf32> to vector<8x128xf32>
    %46 = arith.negf %45 : vector<8x128xf32>
    %47 = math.exp %46 : vector<8x128xf32>
    %cst_23 = arith.constant 1.000000e+00 : f32
    %48 = vector.broadcast %cst_23 : f32 to vector<8x128xf32>
    %49 = arith.addf %48, %47 : vector<8x128xf32>
    %50 = arith.divf %48, %49 : vector<8x128xf32>
    %51 = vector.extract_strided_slice %44 {offsets = [0, 128], sizes = [8, 128], strides = [1, 1]} : vector<8x512xf32> to vector<8x128xf32>
    %52 = arith.negf %51 : vector<8x128xf32>
    %53 = math.exp %52 : vector<8x128xf32>
    %cst_24 = arith.constant 1.000000e+00 : f32
    %54 = vector.broadcast %cst_24 : f32 to vector<8x128xf32>
    %55 = arith.addf %54, %53 : vector<8x128xf32>
    %56 = arith.divf %54, %55 : vector<8x128xf32>
    %57 = vector.extract_strided_slice %44 {offsets = [0, 256], sizes = [8, 128], strides = [1, 1]} : vector<8x512xf32> to vector<8x128xf32>
    %58 = arith.negf %57 : vector<8x128xf32>
    %59 = math.exp %58 : vector<8x128xf32>
    %cst_25 = arith.constant 1.000000e+00 : f32
    %60 = vector.broadcast %cst_25 : f32 to vector<8x128xf32>
    %61 = arith.addf %60, %59 : vector<8x128xf32>
    %62 = arith.divf %60, %61 : vector<8x128xf32>
    %63 = vector.extract_strided_slice %44 {offsets = [0, 384], sizes = [8, 128], strides = [1, 1]} : vector<8x512xf32> to vector<8x128xf32>
    %64 = math.tanh %63 : vector<8x128xf32>
    %65 = arith.mulf %50, %39 : vector<8x128xf32>
    %66 = arith.mulf %56, %64 : vector<8x128xf32>
    %67 = arith.addf %65, %66 : vector<8x128xf32>
    %68 = math.tanh %67 : vector<8x128xf32>
    %69 = arith.mulf %62, %68 : vector<8x128xf32>
    %c0_26 = arith.constant 0 : index
    %c0_27 = arith.constant 0 : index
    %70 = vector.load %arg6[%c0_26, %c0_27] : memref<8x128xf32, #tpu.memory_space<vmem>>, vector<8x128xf32>
    tpu.vector_store %arg6[%c0_26, %c0_27], %67 {strides = array<i32>} : memref<8x128xf32, #tpu.memory_space<vmem>>, vector<8x128xf32>,
    %c0_28 = arith.constant 0 : index
    %c0_29 = arith.constant 0 : index
    %71 = vector.load %arg5[%c0_28, %c0_29] : memref<8x128xf32, #tpu.memory_space<vmem>>, vector<8x128xf32>
    tpu.vector_store %arg5[%c0_28, %c0_29], %69 {strides = array<i32>} : memref<8x128xf32, #tpu.memory_space<vmem>>, vector<8x128xf32>,
    %c0_30 = arith.constant 0 : index
    %c0_31 = arith.constant 0 : index
    %72 = vector.load %arg5[%c0_30, %c0_31] : memref<8x128xf32, #tpu.memory_space<vmem>>, vector<8x128xf32>
    %c0_32 = arith.constant 0 : index
    %c0_33 = arith.constant 0 : index
    %73 = vector.load %arg6[%c0_32, %c0_33] : memref<8x128xf32, #tpu.memory_space<vmem>>, vector<8x128xf32>
    %c2 = arith.constant 2 : index
    %c0_34 = arith.constant 0 : index
    %c0_35 = arith.constant 0 : index
    %74 = vector.load %arg2[%c2, %c0_34, %c0_35] : memref<8x8x512xf32, #tpu.memory_space<vmem>>, vector<1x8x512xf32>
    %75 = vector.shape_cast %74 : vector<1x8x512xf32> to vector<8x512xf32>
    %76 = arith.truncf %72 : vector<8x128xf32> to vector<8x128xbf16>
    %cst_36 = arith.constant dense<0.000000e+00> : vector<8x512xf32>
    %77 = tpu.matmul %76, %3, %cst_36 {dimension_numbers = #tpu.dot_dimension_numbers<[1], [0], [0], [1], [0, 0, 1, 1], [], []>} : vector<8x128xbf16>, vector<128x512xbf16>, vector<8x512xf32> -> vector<8x512xf32>
    %78 = arith.addf %75, %77 : vector<8x512xf32>
    %79 = vector.extract_strided_slice %78 {offsets = [0, 0], sizes = [8, 128], strides = [1, 1]} : vector<8x512xf32> to vector<8x128xf32>
    %80 = arith.negf %79 : vector<8x128xf32>
    %81 = math.exp %80 : vector<8x128xf32>
    %cst_37 = arith.constant 1.000000e+00 : f32
    %82 = vector.broadcast %cst_37 : f32 to vector<8x128xf32>
    %83 = arith.addf %82, %81 : vector<8x128xf32>
    %84 = arith.divf %82, %83 : vector<8x128xf32>
    %85 = vector.extract_strided_slice %78 {offsets = [0, 128], sizes = [8, 128], strides = [1, 1]} : vector<8x512xf32> to vector<8x128xf32>
    %86 = arith.negf %85 : vector<8x128xf32>
    %87 = math.exp %86 : vector<8x128xf32>
    %cst_38 = arith.constant 1.000000e+00 : f32
    %88 = vector.broadcast %cst_38 : f32 to vector<8x128xf32>
    %89 = arith.addf %88, %87 : vector<8x128xf32>
    %90 = arith.divf %88, %89 : vector<8x128xf32>
    %91 = vector.extract_strided_slice %78 {offsets = [0, 256], sizes = [8, 128], strides = [1, 1]} : vector<8x512xf32> to vector<8x128xf32>
    %92 = arith.negf %91 : vector<8x128xf32>
    %93 = math.exp %92 : vector<8x128xf32>
    %cst_39 = arith.constant 1.000000e+00 : f32
    %94 = vector.broadcast %cst_39 : f32 to vector<8x128xf32>
    %95 = arith.addf %94, %93 : vector<8x128xf32>
    %96 = arith.divf %94, %95 : vector<8x128xf32>
    %97 = vector.extract_strided_slice %78 {offsets = [0, 384], sizes = [8, 128], strides = [1, 1]} : vector<8x512xf32> to vector<8x128xf32>
    %98 = math.tanh %97 : vector<8x128xf32>
    %99 = arith.mulf %84, %73 : vector<8x128xf32>
    %100 = arith.mulf %90, %98 : vector<8x128xf32>
    %101 = arith.addf %99, %100 : vector<8x128xf32>
    %102 = math.tanh %101 : vector<8x128xf32>
    %103 = arith.mulf %96, %102 : vector<8x128xf32>
    %c0_40 = arith.constant 0 : index
    %c0_41 = arith.constant 0 : index
    %104 = vector.load %arg6[%c0_40, %c0_41] : memref<8x128xf32, #tpu.memory_space<vmem>>, vector<8x128xf32>
    tpu.vector_store %arg6[%c0_40, %c0_41], %101 {strides = array<i32>} : memref<8x128xf32, #tpu.memory_space<vmem>>, vector<8x128xf32>,
    %c0_42 = arith.constant 0 : index
    %c0_43 = arith.constant 0 : index
    %105 = vector.load %arg5[%c0_42, %c0_43] : memref<8x128xf32, #tpu.memory_space<vmem>>, vector<8x128xf32>
    tpu.vector_store %arg5[%c0_42, %c0_43], %103 {strides = array<i32>} : memref<8x128xf32, #tpu.memory_space<vmem>>, vector<8x128xf32>,
    %c0_44 = arith.constant 0 : index
    %c0_45 = arith.constant 0 : index
    %106 = vector.load %arg5[%c0_44, %c0_45] : memref<8x128xf32, #tpu.memory_space<vmem>>, vector<8x128xf32>
    %c0_46 = arith.constant 0 : index
    %c0_47 = arith.constant 0 : index
    %107 = vector.load %arg6[%c0_46, %c0_47] : memref<8x128xf32, #tpu.memory_space<vmem>>, vector<8x128xf32>
    %c3 = arith.constant 3 : index
    %c0_48 = arith.constant 0 : index
    %c0_49 = arith.constant 0 : index
    %108 = vector.load %arg2[%c3, %c0_48, %c0_49] : memref<8x8x512xf32, #tpu.memory_space<vmem>>, vector<1x8x512xf32>
    %109 = vector.shape_cast %108 : vector<1x8x512xf32> to vector<8x512xf32>
    %110 = arith.truncf %106 : vector<8x128xf32> to vector<8x128xbf16>
    %cst_50 = arith.constant dense<0.000000e+00> : vector<8x512xf32>
    %111 = tpu.matmul %110, %3, %cst_50 {dimension_numbers = #tpu.dot_dimension_numbers<[1], [0], [0], [1], [0, 0, 1, 1], [], []>} : vector<8x128xbf16>, vector<128x512xbf16>, vector<8x512xf32> -> vector<8x512xf32>
    %112 = arith.addf %109, %111 : vector<8x512xf32>
    %113 = vector.extract_strided_slice %112 {offsets = [0, 0], sizes = [8, 128], strides = [1, 1]} : vector<8x512xf32> to vector<8x128xf32>
    %114 = arith.negf %113 : vector<8x128xf32>
    %115 = math.exp %114 : vector<8x128xf32>
    %cst_51 = arith.constant 1.000000e+00 : f32
    %116 = vector.broadcast %cst_51 : f32 to vector<8x128xf32>
    %117 = arith.addf %116, %115 : vector<8x128xf32>
    %118 = arith.divf %116, %117 : vector<8x128xf32>
    %119 = vector.extract_strided_slice %112 {offsets = [0, 128], sizes = [8, 128], strides = [1, 1]} : vector<8x512xf32> to vector<8x128xf32>
    %120 = arith.negf %119 : vector<8x128xf32>
    %121 = math.exp %120 : vector<8x128xf32>
    %cst_52 = arith.constant 1.000000e+00 : f32
    %122 = vector.broadcast %cst_52 : f32 to vector<8x128xf32>
    %123 = arith.addf %122, %121 : vector<8x128xf32>
    %124 = arith.divf %122, %123 : vector<8x128xf32>
    %125 = vector.extract_strided_slice %112 {offsets = [0, 256], sizes = [8, 128], strides = [1, 1]} : vector<8x512xf32> to vector<8x128xf32>
    %126 = arith.negf %125 : vector<8x128xf32>
    %127 = math.exp %126 : vector<8x128xf32>
    %cst_53 = arith.constant 1.000000e+00 : f32
    %128 = vector.broadcast %cst_53 : f32 to vector<8x128xf32>
    %129 = arith.addf %128, %127 : vector<8x128xf32>
    %130 = arith.divf %128, %129 : vector<8x128xf32>
    %131 = vector.extract_strided_slice %112 {offsets = [0, 384], sizes = [8, 128], strides = [1, 1]} : vector<8x512xf32> to vector<8x128xf32>
    %132 = math.tanh %131 : vector<8x128xf32>
    %133 = arith.mulf %118, %107 : vector<8x128xf32>
    %134 = arith.mulf %124, %132 : vector<8x128xf32>
    %135 = arith.addf %133, %134 : vector<8x128xf32>
    %136 = math.tanh %135 : vector<8x128xf32>
    %137 = arith.mulf %130, %136 : vector<8x128xf32>
    %c0_54 = arith.constant 0 : index
    %c0_55 = arith.constant 0 : index
    %138 = vector.load %arg6[%c0_54, %c0_55] : memref<8x128xf32, #tpu.memory_space<vmem>>, vector<8x128xf32>
    tpu.vector_store %arg6[%c0_54, %c0_55], %135 {strides = array<i32>} : memref<8x128xf32, #tpu.memory_space<vmem>>, vector<8x128xf32>,
    %c0_56 = arith.constant 0 : index
    %c0_57 = arith.constant 0 : index
    %139 = vector.load %arg5[%c0_56, %c0_57] : memref<8x128xf32, #tpu.memory_space<vmem>>, vector<8x128xf32>
    tpu.vector_store %arg5[%c0_56, %c0_57], %137 {strides = array<i32>} : memref<8x128xf32, #tpu.memory_space<vmem>>, vector<8x128xf32>,
    %c0_58 = arith.constant 0 : index
    %c0_59 = arith.constant 0 : index
    %140 = vector.load %arg5[%c0_58, %c0_59] : memref<8x128xf32, #tpu.memory_space<vmem>>, vector<8x128xf32>
    %c0_60 = arith.constant 0 : index
    %c0_61 = arith.constant 0 : index
    %141 = vector.load %arg6[%c0_60, %c0_61] : memref<8x128xf32, #tpu.memory_space<vmem>>, vector<8x128xf32>
    %c4 = arith.constant 4 : index
    %c0_62 = arith.constant 0 : index
    %c0_63 = arith.constant 0 : index
    %142 = vector.load %arg2[%c4, %c0_62, %c0_63] : memref<8x8x512xf32, #tpu.memory_space<vmem>>, vector<1x8x512xf32>
    %143 = vector.shape_cast %142 : vector<1x8x512xf32> to vector<8x512xf32>
    %144 = arith.truncf %140 : vector<8x128xf32> to vector<8x128xbf16>
    %cst_64 = arith.constant dense<0.000000e+00> : vector<8x512xf32>
    %145 = tpu.matmul %144, %3, %cst_64 {dimension_numbers = #tpu.dot_dimension_numbers<[1], [0], [0], [1], [0, 0, 1, 1], [], []>} : vector<8x128xbf16>, vector<128x512xbf16>, vector<8x512xf32> -> vector<8x512xf32>
    %146 = arith.addf %143, %145 : vector<8x512xf32>
    %147 = vector.extract_strided_slice %146 {offsets = [0, 0], sizes = [8, 128], strides = [1, 1]} : vector<8x512xf32> to vector<8x128xf32>
    %148 = arith.negf %147 : vector<8x128xf32>
    %149 = math.exp %148 : vector<8x128xf32>
    %cst_65 = arith.constant 1.000000e+00 : f32
    %150 = vector.broadcast %cst_65 : f32 to vector<8x128xf32>
    %151 = arith.addf %150, %149 : vector<8x128xf32>
    %152 = arith.divf %150, %151 : vector<8x128xf32>
    %153 = vector.extract_strided_slice %146 {offsets = [0, 128], sizes = [8, 128], strides = [1, 1]} : vector<8x512xf32> to vector<8x128xf32>
    %154 = arith.negf %153 : vector<8x128xf32>
    %155 = math.exp %154 : vector<8x128xf32>
    %cst_66 = arith.constant 1.000000e+00 : f32
    %156 = vector.broadcast %cst_66 : f32 to vector<8x128xf32>
    %157 = arith.addf %156, %155 : vector<8x128xf32>
    %158 = arith.divf %156, %157 : vector<8x128xf32>
    %159 = vector.extract_strided_slice %146 {offsets = [0, 256], sizes = [8, 128], strides = [1, 1]} : vector<8x512xf32> to vector<8x128xf32>
    %160 = arith.negf %159 : vector<8x128xf32>
    %161 = math.exp %160 : vector<8x128xf32>
    %cst_67 = arith.constant 1.000000e+00 : f32
    %162 = vector.broadcast %cst_67 : f32 to vector<8x128xf32>
    %163 = arith.addf %162, %161 : vector<8x128xf32>
    %164 = arith.divf %162, %163 : vector<8x128xf32>
    %165 = vector.extract_strided_slice %146 {offsets = [0, 384], sizes = [8, 128], strides = [1, 1]} : vector<8x512xf32> to vector<8x128xf32>
    %166 = math.tanh %165 : vector<8x128xf32>
    %167 = arith.mulf %152, %141 : vector<8x128xf32>
    %168 = arith.mulf %158, %166 : vector<8x128xf32>
    %169 = arith.addf %167, %168 : vector<8x128xf32>
    %170 = math.tanh %169 : vector<8x128xf32>
    %171 = arith.mulf %164, %170 : vector<8x128xf32>
    %c0_68 = arith.constant 0 : index
    %c0_69 = arith.constant 0 : index
    %172 = vector.load %arg6[%c0_68, %c0_69] : memref<8x128xf32, #tpu.memory_space<vmem>>, vector<8x128xf32>
    tpu.vector_store %arg6[%c0_68, %c0_69], %169 {strides = array<i32>} : memref<8x128xf32, #tpu.memory_space<vmem>>, vector<8x128xf32>,
    %c0_70 = arith.constant 0 : index
    %c0_71 = arith.constant 0 : index
    %173 = vector.load %arg5[%c0_70, %c0_71] : memref<8x128xf32, #tpu.memory_space<vmem>>, vector<8x128xf32>
    tpu.vector_store %arg5[%c0_70, %c0_71], %171 {strides = array<i32>} : memref<8x128xf32, #tpu.memory_space<vmem>>, vector<8x128xf32>,
    %c0_72 = arith.constant 0 : index
    %c0_73 = arith.constant 0 : index
    %174 = vector.load %arg5[%c0_72, %c0_73] : memref<8x128xf32, #tpu.memory_space<vmem>>, vector<8x128xf32>
    %c0_74 = arith.constant 0 : index
    %c0_75 = arith.constant 0 : index
    %175 = vector.load %arg6[%c0_74, %c0_75] : memref<8x128xf32, #tpu.memory_space<vmem>>, vector<8x128xf32>
    %c5 = arith.constant 5 : index
    %c0_76 = arith.constant 0 : index
    %c0_77 = arith.constant 0 : index
    %176 = vector.load %arg2[%c5, %c0_76, %c0_77] : memref<8x8x512xf32, #tpu.memory_space<vmem>>, vector<1x8x512xf32>
    %177 = vector.shape_cast %176 : vector<1x8x512xf32> to vector<8x512xf32>
    %178 = arith.truncf %174 : vector<8x128xf32> to vector<8x128xbf16>
    %cst_78 = arith.constant dense<0.000000e+00> : vector<8x512xf32>
    %179 = tpu.matmul %178, %3, %cst_78 {dimension_numbers = #tpu.dot_dimension_numbers<[1], [0], [0], [1], [0, 0, 1, 1], [], []>} : vector<8x128xbf16>, vector<128x512xbf16>, vector<8x512xf32> -> vector<8x512xf32>
    %180 = arith.addf %177, %179 : vector<8x512xf32>
    %181 = vector.extract_strided_slice %180 {offsets = [0, 0], sizes = [8, 128], strides = [1, 1]} : vector<8x512xf32> to vector<8x128xf32>
    %182 = arith.negf %181 : vector<8x128xf32>
    %183 = math.exp %182 : vector<8x128xf32>
    %cst_79 = arith.constant 1.000000e+00 : f32
    %184 = vector.broadcast %cst_79 : f32 to vector<8x128xf32>
    %185 = arith.addf %184, %183 : vector<8x128xf32>
    %186 = arith.divf %184, %185 : vector<8x128xf32>
    %187 = vector.extract_strided_slice %180 {offsets = [0, 128], sizes = [8, 128], strides = [1, 1]} : vector<8x512xf32> to vector<8x128xf32>
    %188 = arith.negf %187 : vector<8x128xf32>
    %189 = math.exp %188 : vector<8x128xf32>
    %cst_80 = arith.constant 1.000000e+00 : f32
    %190 = vector.broadcast %cst_80 : f32 to vector<8x128xf32>
    %191 = arith.addf %190, %189 : vector<8x128xf32>
    %192 = arith.divf %190, %191 : vector<8x128xf32>
    %193 = vector.extract_strided_slice %180 {offsets = [0, 256], sizes = [8, 128], strides = [1, 1]} : vector<8x512xf32> to vector<8x128xf32>
    %194 = arith.negf %193 : vector<8x128xf32>
    %195 = math.exp %194 : vector<8x128xf32>
    %cst_81 = arith.constant 1.000000e+00 : f32
    %196 = vector.broadcast %cst_81 : f32 to vector<8x128xf32>
    %197 = arith.addf %196, %195 : vector<8x128xf32>
    %198 = arith.divf %196, %197 : vector<8x128xf32>
    %199 = vector.extract_strided_slice %180 {offsets = [0, 384], sizes = [8, 128], strides = [1, 1]} : vector<8x512xf32> to vector<8x128xf32>
    %200 = math.tanh %199 : vector<8x128xf32>
    %201 = arith.mulf %186, %175 : vector<8x128xf32>
    %202 = arith.mulf %192, %200 : vector<8x128xf32>
    %203 = arith.addf %201, %202 : vector<8x128xf32>
    %204 = math.tanh %203 : vector<8x128xf32>
    %205 = arith.mulf %198, %204 : vector<8x128xf32>
    %c0_82 = arith.constant 0 : index
    %c0_83 = arith.constant 0 : index
    %206 = vector.load %arg6[%c0_82, %c0_83] : memref<8x128xf32, #tpu.memory_space<vmem>>, vector<8x128xf32>
    tpu.vector_store %arg6[%c0_82, %c0_83], %203 {strides = array<i32>} : memref<8x128xf32, #tpu.memory_space<vmem>>, vector<8x128xf32>,
    %c0_84 = arith.constant 0 : index
    %c0_85 = arith.constant 0 : index
    %207 = vector.load %arg5[%c0_84, %c0_85] : memref<8x128xf32, #tpu.memory_space<vmem>>, vector<8x128xf32>
    tpu.vector_store %arg5[%c0_84, %c0_85], %205 {strides = array<i32>} : memref<8x128xf32, #tpu.memory_space<vmem>>, vector<8x128xf32>,
    %c0_86 = arith.constant 0 : index
    %c0_87 = arith.constant 0 : index
    %208 = vector.load %arg5[%c0_86, %c0_87] : memref<8x128xf32, #tpu.memory_space<vmem>>, vector<8x128xf32>
    %c0_88 = arith.constant 0 : index
    %c0_89 = arith.constant 0 : index
    %209 = vector.load %arg6[%c0_88, %c0_89] : memref<8x128xf32, #tpu.memory_space<vmem>>, vector<8x128xf32>
    %c6 = arith.constant 6 : index
    %c0_90 = arith.constant 0 : index
    %c0_91 = arith.constant 0 : index
    %210 = vector.load %arg2[%c6, %c0_90, %c0_91] : memref<8x8x512xf32, #tpu.memory_space<vmem>>, vector<1x8x512xf32>
    %211 = vector.shape_cast %210 : vector<1x8x512xf32> to vector<8x512xf32>
    %212 = arith.truncf %208 : vector<8x128xf32> to vector<8x128xbf16>
    %cst_92 = arith.constant dense<0.000000e+00> : vector<8x512xf32>
    %213 = tpu.matmul %212, %3, %cst_92 {dimension_numbers = #tpu.dot_dimension_numbers<[1], [0], [0], [1], [0, 0, 1, 1], [], []>} : vector<8x128xbf16>, vector<128x512xbf16>, vector<8x512xf32> -> vector<8x512xf32>
    %214 = arith.addf %211, %213 : vector<8x512xf32>
    %215 = vector.extract_strided_slice %214 {offsets = [0, 0], sizes = [8, 128], strides = [1, 1]} : vector<8x512xf32> to vector<8x128xf32>
    %216 = arith.negf %215 : vector<8x128xf32>
    %217 = math.exp %216 : vector<8x128xf32>
    %cst_93 = arith.constant 1.000000e+00 : f32
    %218 = vector.broadcast %cst_93 : f32 to vector<8x128xf32>
    %219 = arith.addf %218, %217 : vector<8x128xf32>
    %220 = arith.divf %218, %219 : vector<8x128xf32>
    %221 = vector.extract_strided_slice %214 {offsets = [0, 128], sizes = [8, 128], strides = [1, 1]} : vector<8x512xf32> to vector<8x128xf32>
    %222 = arith.negf %221 : vector<8x128xf32>
    %223 = math.exp %222 : vector<8x128xf32>
    %cst_94 = arith.constant 1.000000e+00 : f32
    %224 = vector.broadcast %cst_94 : f32 to vector<8x128xf32>
    %225 = arith.addf %224, %223 : vector<8x128xf32>
    %226 = arith.divf %224, %225 : vector<8x128xf32>
    %227 = vector.extract_strided_slice %214 {offsets = [0, 256], sizes = [8, 128], strides = [1, 1]} : vector<8x512xf32> to vector<8x128xf32>
    %228 = arith.negf %227 : vector<8x128xf32>
    %229 = math.exp %228 : vector<8x128xf32>
    %cst_95 = arith.constant 1.000000e+00 : f32
    %230 = vector.broadcast %cst_95 : f32 to vector<8x128xf32>
    %231 = arith.addf %230, %229 : vector<8x128xf32>
    %232 = arith.divf %230, %231 : vector<8x128xf32>
    %233 = vector.extract_strided_slice %214 {offsets = [0, 384], sizes = [8, 128], strides = [1, 1]} : vector<8x512xf32> to vector<8x128xf32>
    %234 = math.tanh %233 : vector<8x128xf32>
    %235 = arith.mulf %220, %209 : vector<8x128xf32>
    %236 = arith.mulf %226, %234 : vector<8x128xf32>
    %237 = arith.addf %235, %236 : vector<8x128xf32>
    %238 = math.tanh %237 : vector<8x128xf32>
    %239 = arith.mulf %232, %238 : vector<8x128xf32>
    %c0_96 = arith.constant 0 : index
    %c0_97 = arith.constant 0 : index
    %240 = vector.load %arg6[%c0_96, %c0_97] : memref<8x128xf32, #tpu.memory_space<vmem>>, vector<8x128xf32>
    tpu.vector_store %arg6[%c0_96, %c0_97], %237 {strides = array<i32>} : memref<8x128xf32, #tpu.memory_space<vmem>>, vector<8x128xf32>,
    %c0_98 = arith.constant 0 : index
    %c0_99 = arith.constant 0 : index
    %241 = vector.load %arg5[%c0_98, %c0_99] : memref<8x128xf32, #tpu.memory_space<vmem>>, vector<8x128xf32>
    tpu.vector_store %arg5[%c0_98, %c0_99], %239 {strides = array<i32>} : memref<8x128xf32, #tpu.memory_space<vmem>>, vector<8x128xf32>,
    %c0_100 = arith.constant 0 : index
    %c0_101 = arith.constant 0 : index
    %242 = vector.load %arg5[%c0_100, %c0_101] : memref<8x128xf32, #tpu.memory_space<vmem>>, vector<8x128xf32>
    %c0_102 = arith.constant 0 : index
    %c0_103 = arith.constant 0 : index
    %243 = vector.load %arg6[%c0_102, %c0_103] : memref<8x128xf32, #tpu.memory_space<vmem>>, vector<8x128xf32>
    %c7 = arith.constant 7 : index
    %c0_104 = arith.constant 0 : index
    %c0_105 = arith.constant 0 : index
    %244 = vector.load %arg2[%c7, %c0_104, %c0_105] : memref<8x8x512xf32, #tpu.memory_space<vmem>>, vector<1x8x512xf32>
    %245 = vector.shape_cast %244 : vector<1x8x512xf32> to vector<8x512xf32>
    %246 = arith.truncf %242 : vector<8x128xf32> to vector<8x128xbf16>
    %cst_106 = arith.constant dense<0.000000e+00> : vector<8x512xf32>
    %247 = tpu.matmul %246, %3, %cst_106 {dimension_numbers = #tpu.dot_dimension_numbers<[1], [0], [0], [1], [0, 0, 1, 1], [], []>} : vector<8x128xbf16>, vector<128x512xbf16>, vector<8x512xf32> -> vector<8x512xf32>
    %248 = arith.addf %245, %247 : vector<8x512xf32>
    %249 = vector.extract_strided_slice %248 {offsets = [0, 0], sizes = [8, 128], strides = [1, 1]} : vector<8x512xf32> to vector<8x128xf32>
    %250 = arith.negf %249 : vector<8x128xf32>
    %251 = math.exp %250 : vector<8x128xf32>
    %cst_107 = arith.constant 1.000000e+00 : f32
    %252 = vector.broadcast %cst_107 : f32 to vector<8x128xf32>
    %253 = arith.addf %252, %251 : vector<8x128xf32>
    %254 = arith.divf %252, %253 : vector<8x128xf32>
    %255 = vector.extract_strided_slice %248 {offsets = [0, 128], sizes = [8, 128], strides = [1, 1]} : vector<8x512xf32> to vector<8x128xf32>
    %256 = arith.negf %255 : vector<8x128xf32>
    %257 = math.exp %256 : vector<8x128xf32>
    %cst_108 = arith.constant 1.000000e+00 : f32
    %258 = vector.broadcast %cst_108 : f32 to vector<8x128xf32>
    %259 = arith.addf %258, %257 : vector<8x128xf32>
    %260 = arith.divf %258, %259 : vector<8x128xf32>
    %261 = vector.extract_strided_slice %248 {offsets = [0, 256], sizes = [8, 128], strides = [1, 1]} : vector<8x512xf32> to vector<8x128xf32>
    %262 = arith.negf %261 : vector<8x128xf32>
    %263 = math.exp %262 : vector<8x128xf32>
    %cst_109 = arith.constant 1.000000e+00 : f32
    %264 = vector.broadcast %cst_109 : f32 to vector<8x128xf32>
    %265 = arith.addf %264, %263 : vector<8x128xf32>
    %266 = arith.divf %264, %265 : vector<8x128xf32>
    %267 = vector.extract_strided_slice %248 {offsets = [0, 384], sizes = [8, 128], strides = [1, 1]} : vector<8x512xf32> to vector<8x128xf32>
    %268 = math.tanh %267 : vector<8x128xf32>
    %269 = arith.mulf %254, %243 : vector<8x128xf32>
    %270 = arith.mulf %260, %268 : vector<8x128xf32>
    %271 = arith.addf %269, %270 : vector<8x128xf32>
    %272 = math.tanh %271 : vector<8x128xf32>
    %273 = arith.mulf %266, %272 : vector<8x128xf32>
    %c0_110 = arith.constant 0 : index
    %c0_111 = arith.constant 0 : index
    %274 = vector.load %arg6[%c0_110, %c0_111] : memref<8x128xf32, #tpu.memory_space<vmem>>, vector<8x128xf32>
    tpu.vector_store %arg6[%c0_110, %c0_111], %271 {strides = array<i32>} : memref<8x128xf32, #tpu.memory_space<vmem>>, vector<8x128xf32>,
    %c0_112 = arith.constant 0 : index
    %c0_113 = arith.constant 0 : index
    %275 = vector.load %arg5[%c0_112, %c0_113] : memref<8x128xf32, #tpu.memory_space<vmem>>, vector<8x128xf32>
    tpu.vector_store %arg5[%c0_112, %c0_113], %273 {strides = array<i32>} : memref<8x128xf32, #tpu.memory_space<vmem>>, vector<8x128xf32>,
    %c0_i32_114 = arith.constant 0 : i32
    %276 = arith.cmpi eq, %arg1, %c0_i32_114 : i32
    %277 = arith.extui %276 : i1 to i32
    %c0_i32_115 = arith.constant 0 : i32
    %278 = arith.cmpi ne, %277, %c0_i32_115 : i32
    scf.if %278 {
      %c0_116 = arith.constant 0 : index
      %c0_117 = arith.constant 0 : index
      %279 = vector.load %arg5[%c0_116, %c0_117] : memref<8x128xf32, #tpu.memory_space<vmem>>, vector<8x128xf32>
      %c0_118 = arith.constant 0 : index
      %c0_119 = arith.constant 0 : index
      %280 = vector.load %arg4[%c0_118, %c0_119] : memref<8x128xf32, #tpu.memory_space<vmem>>, vector<8x128xf32>
      tpu.vector_store %arg4[%c0_118, %c0_119], %279 {strides = array<i32>} : memref<8x128xf32, #tpu.memory_space<vmem>>, vector<8x128xf32>,
    } else {
    }
    return
  }
  func.func @transform_0(%arg0: i32, %arg1: i32) -> (i32, i32, i32) {
    %c0_i32 = arith.constant 0 : i32
    %c0_i32_0 = arith.constant 0 : i32
    return %arg1, %arg0, %c0_i32 : i32, i32, i32
  }
  func.func @transform_1(%arg0: i32, %arg1: i32) -> (i32, i32) {
    %c0_i32 = arith.constant 0 : i32
    %c0_i32_0 = arith.constant 0 : i32
    %c0_i32_1 = arith.constant 0 : i32
    return %c0_i32, %c0_i32_0 : i32, i32
  }
  func.func @transform_2(%arg0: i32, %arg1: i32) -> (i32, i32) {
    %c0_i32 = arith.constant 0 : i32
    %c0_i32_0 = arith.constant 0 : i32
    return %arg0, %c0_i32 : i32, i32
  }
}

</mosaic_0001>

<llo_original>
// kernel: lstm_forward.2
$region0: #{lstm_forward.2}
  #allocation0 [shape = 'u32[]', space=smem, size = 0x4, offset = 0x4, fixed_abs, tag = 'smem constant byte address 0x4 - core index']
  #allocation1 [shape = 'u32[144,128]{1,0:T(1,128)}', space=vmem, size = 0x12000, scoped, tag = 'internal scratch']
  %s0 = inlined_call_operand.vmem [shape: bf16[64,16], index: 0, kind: input, shape index: {}]
  %s1 = inlined_call_operand.vmem [shape: bf16[16,512], index: 1, kind: input, shape index: {}]
  %s2 = inlined_call_operand.vmem [shape: f32[1,512], index: 2, kind: input, shape index: {}]
  %s3 = inlined_call_operand.vmem [shape: f32[64,512], index: 3, kind: output, shape index: {}]
  %s4 = sld [smem:[#allocation0]]
  $region22: #{lstm_forward.2} parent=0
    _
  %s6 = ssub.s32 1, %s4
  %s7 = scalar_select 0, %s6, %s4
  // Predicated region
  $region2: #{lstm_forward.2} parent=0 // pred_check
    _
  $region3: #{lstm_forward.2} parent=0 // pred_check_branch
    %9 = sbr.rel (0) target = $region5
  $region4: #{lstm_forward.2} parent=0 // pred_region
    _
  $region5: #{lstm_forward.2} parent=0 // pred_fallthru
    _
  // Predicated region
  $region6: #{lstm_forward.2} parent=0 // pred_check
    _
  $region7: #{lstm_forward.2} parent=0 // pred_check_branch
    %11 = sbr.rel (0) target = $region9
  $region8: #{lstm_forward.2} parent=0 // pred_region
    _
  $region9: #{lstm_forward.2} parent=0 // pred_fallthru
    _
  // Predicated region
  $region10: #{lstm_forward.2} parent=0 // pred_check
    _
  $region11: #{lstm_forward.2} parent=0 // pred_check_branch
    %13 = sbr.rel (0) target = $region13
  $region12: #{lstm_forward.2} parent=0 // pred_region
    _
  $region13: #{lstm_forward.2} parent=0 // pred_fallthru
    _
  %v15 = vld [vmem:[%s0] sm:$0xf]
  %v16 = vld [vmem:[%s0 + $0x4] sm:$0xf]
  %v17 = vld [vmem:[%s0 + $0x8] sm:$0xf]
  %v18 = vld [vmem:[%s0 + $0xc] sm:$0xf]
  %v19 = vld [vmem:[%s0 + $0x10] sm:$0xf]
  %v20 = vld [vmem:[%s0 + $0x14] sm:$0xf]
  %v21 = vld [vmem:[%s0 + $0x18] sm:$0xf]
  %v22 = vld [vmem:[%s0 + $0x1c] sm:$0xf]
  %v23 = vld [vmem:[%s1] sm:$0xff]
  %v24 = vld [vmem:[%s1 + $0x8] sm:$0xff]
  %v25 = vld [vmem:[%s1 + $0x10] sm:$0xff]
  %v26 = vld [vmem:[%s1 + $0x18] sm:$0xff]
  %v27 = vld [vmem:[%s2] sm:$0xf]
  %v29 = vlaneseq
  %v30 = vshrl.u32 %v29, 7
  %v31 = vsub.s32 0, %v30
  %v32 = vrot.slane %v27, %v31
  %v33 = vlaneseq
  %v34 = vshrl.u32 %v33, 7
  %v35 = vsub.s32 1, %v34
  %v36 = vrot.slane %v27, %v35
  %v37 = vlaneseq
  %v38 = vshrl.u32 %v37, 7
  %v39 = vsub.s32 2, %v38
  %v40 = vrot.slane %v27, %v39
  %v41 = vlaneseq
  %v42 = vshrl.u32 %v41, 7
  %v43 = vsub.s32 3, %v42
  %v44 = vrot.slane %v27, %v43
  %v57 = vunpack.c.l.b16 %v15
  %v58 = vunpack.c.l.b16 %v16
  %v59 = vunpack.c.l.b16 %v17
  %v60 = vunpack.c.l.b16 %v18
  %v61 = vunpack.c.l.b16 %v19
  %v62 = vunpack.c.l.b16 %v20
  %v63 = vunpack.c.l.b16 %v21
  %v64 = vunpack.c.l.b16 %v22
  %v65 = vpack.c.b16 %v58, %v57
  %v66 = vpack.c.b16 %v60, %v59
  %v67 = vpack.c.b16 %v62, %v61
  %v68 = vpack.c.b16 %v64, %v63
  %v73 = vunpack.c.l.b16 %v23
  %v74 = vunpack.c.h.b16 %v23
  %v75 = vunpack.c.l.b16 %v24
  %v76 = vunpack.c.h.b16 %v24
  %v77 = vunpack.c.l.b16 %v25
  %v78 = vunpack.c.h.b16 %v25
  %v79 = vunpack.c.l.b16 %v26
  %v80 = vunpack.c.h.b16 %v26
  %v81 = vpack.c.b16 %v77, %v73
  %v82 = vpack.c.b16 %v78, %v74
  %v83 = vpack.c.b16 %v79, %v75
  %v84 = vpack.c.b16 %v80, %v76
  %vm89 = vcmask 130048
  %v91 = vsel %vm89, %v65, 0
  %v94 = vsel %vm89, %v66, 0
  %v97 = vsel %vm89, %v67, 0
  %v100 = vsel %vm89, %v68, 0
  %102 = vmatprep.subr.bf16.mxu0 %v82
  %103 = vmatpush1.bf16.msra.mxu0 %v81
  %104 = vmatprep.subr.bf16.mxu0 0
  %105 = vmatpush1.bf16.msra.mxu0 0
  %106 = vmatprep.subr.bf16.mxu0 0
  %107 = vmatpush1.bf16.msra.mxu0 0
  %108 = vmatprep.subr.bf16.mxu0 0
  %109 = vmatpush1.bf16.msra.mxu0 0
  %110 = vmatprep.subr.bf16.mxu0 0
  %111 = vmatpush1.bf16.msra.mxu0 0
  %112 = vmatprep.subr.bf16.mxu0 0
  %113 = vmatpush1.bf16.msra.mxu0 0
  %114 = vmatprep.subr.bf16.mxu0 0
  %115 = vmatpush1.bf16.msra.mxu0 0
  %116 = vmatprep.subr.bf16.mxu0 0
  %117 = vmatpush1.bf16.msra.mxu0 0
  %118 = vmatprep.subr.bf16.mxu0 0
  %119 = vmatpush1.bf16.msra.mxu0 0
  %120 = vmatprep.subr.bf16.mxu0 0
  %121 = vmatpush1.bf16.msra.mxu0 0
  %122 = vmatprep.subr.bf16.mxu0 0
  %123 = vmatpush1.bf16.msra.mxu0 0
  %124 = vmatprep.subr.bf16.mxu0 0
  %125 = vmatpush1.bf16.msra.mxu0 0
  %126 = vmatprep.subr.bf16.mxu0 0
  %127 = vmatpush1.bf16.msra.mxu0 0
  %128 = vmatprep.subr.bf16.mxu0 0
  %129 = vmatpush1.bf16.msra.mxu0 0
  %130 = vmatprep.subr.bf16.mxu0 0
  %131 = vmatpush1.bf16.msra.mxu0 0
  %132 = vmatprep.subr.bf16.mxu0 0
  %133 = vmatpush1.bf16.msra.mxu0 0
  %134 = vmatprep.mubr.bf16.mxu0 0
  %135 = vmatmul.mubr.bf16.gmra.mrb[0].mxu0 %v91
  %v136 = vpop.f32.mrb[0].mxu0
  %v137 = vadd.f32 %v32, %v136
  %v138 = vpop.f32.mrb[0].mxu0
  %v139 = vadd.f32 %v36, %v138
  %v140 = vpop.f32.mrb[0].mxu0
  %v141 = vadd.f32 %v32, %v140
  %v142 = vpop.f32.mrb[0].mxu0
  %v143 = vadd.f32 %v36, %v142
  %144 = vmatprep.mubr.bf16.mxu0 0
  %145 = vmatmul.mubr.bf16.gmra.mrb[0].mxu0 %v94
  %v146 = vpop.f32.mrb[0].mxu0
  %v147 = vadd.f32 %v32, %v146
  %v148 = vpop.f32.mrb[0].mxu0
  %v149 = vadd.f32 %v36, %v148
  %v150 = vpop.f32.mrb[0].mxu0
  %v151 = vadd.f32 %v32, %v150
  %v152 = vpop.f32.mrb[0].mxu0
  %v153 = vadd.f32 %v36, %v152
  %154 = vmatprep.mubr.bf16.mxu0 0
  %155 = vmatmul.mubr.bf16.gmra.mrb[0].mxu0 %v97
  %v156 = vpop.f32.mrb[0].mxu0
  %v157 = vadd.f32 %v32, %v156
  %v158 = vpop.f32.mrb[0].mxu0
  %v159 = vadd.f32 %v36, %v158
  %v160 = vpop.f32.mrb[0].mxu0
  %v161 = vadd.f32 %v32, %v160
  %v162 = vpop.f32.mrb[0].mxu0
  %v163 = vadd.f32 %v36, %v162
  %164 = vmatprep.mubr.bf16.mxu0 0
  %165 = vmatmul.mubr.bf16.gmra.mrb[0].mxu0 %v100
  %v166 = vpop.f32.mrb[0].mxu0
  %v167 = vadd.f32 %v32, %v166
  %v168 = vpop.f32.mrb[0].mxu0
  %v169 = vadd.f32 %v36, %v168
  %v170 = vpop.f32.mrb[0].mxu0
  %v171 = vadd.f32 %v32, %v170
  %v172 = vpop.f32.mrb[0].mxu0
  %v173 = vadd.f32 %v36, %v172
  %174 = vdwg.mxu0
  %175 = vmatprep.subr.bf16.mxu0 %v84
  %176 = vmatpush1.bf16.msra.mxu0 %v83
  %177 = vmatprep.subr.bf16.mxu0 0
  %178 = vmatpush1.bf16.msra.mxu0 0
  %179 = vmatprep.subr.bf16.mxu0 0
  %180 = vmatpush1.bf16.msra.mxu0 0
  %181 = vmatprep.subr.bf16.mxu0 0
  %182 = vmatpush1.bf16.msra.mxu0 0
  %183 = vmatprep.subr.bf16.mxu0 0
  %184 = vmatpush1.bf16.msra.mxu0 0
  %185 = vmatprep.subr.bf16.mxu0 0
  %186 = vmatpush1.bf16.msra.mxu0 0
  %187 = vmatprep.subr.bf16.mxu0 0
  %188 = vmatpush1.bf16.msra.mxu0 0
  %189 = vmatprep.subr.bf16.mxu0 0
  %190 = vmatpush1.bf16.msra.mxu0 0
  %191 = vmatprep.subr.bf16.mxu0 0
  %192 = vmatpush1.bf16.msra.mxu0 0
  %193 = vmatprep.subr.bf16.mxu0 0
  %194 = vmatpush1.bf16.msra.mxu0 0
  %195 = vmatprep.subr.bf16.mxu0 0
  %196 = vmatpush1.bf16.msra.mxu0 0
  %197 = vmatprep.subr.bf16.mxu0 0
  %198 = vmatpush1.bf16.msra.mxu0 0
  %199 = vmatprep.subr.bf16.mxu0 0
  %200 = vmatpush1.bf16.msra.mxu0 0
  %201 = vmatprep.subr.bf16.mxu0 0
  %202 = vmatpush1.bf16.msra.mxu0 0
  %203 = vmatprep.subr.bf16.mxu0 0
  %204 = vmatpush1.bf16.msra.mxu0 0
  %205 = vmatprep.subr.bf16.mxu0 0
  %206 = vmatpush1.bf16.msra.mxu0 0
  %207 = vmatprep.mubr.bf16.mxu0 0
  %208 = vmatmul.mubr.bf16.gmra.mrb[0].mxu0 %v91
  %v209 = vpop.f32.mrb[0].mxu0
  %v210 = vadd.f32 %v40, %v209
  %v211 = vpop.f32.mrb[0].mxu0
  %v212 = vadd.f32 %v44, %v211
  %v213 = vpop.f32.mrb[0].mxu0
  %v214 = vadd.f32 %v40, %v213
  %v215 = vpop.f32.mrb[0].mxu0
  %v216 = vadd.f32 %v44, %v215
  %217 = vmatprep.mubr.bf16.mxu0 0
  %218 = vmatmul.mubr.bf16.gmra.mrb[0].mxu0 %v94
  %v219 = vpop.f32.mrb[0].mxu0
  %v220 = vadd.f32 %v40, %v219
  %v221 = vpop.f32.mrb[0].mxu0
  %v222 = vadd.f32 %v44, %v221
  %v223 = vpop.f32.mrb[0].mxu0
  %v224 = vadd.f32 %v40, %v223
  %v225 = vpop.f32.mrb[0].mxu0
  %v226 = vadd.f32 %v44, %v225
  %227 = vmatprep.mubr.bf16.mxu0 0
  %228 = vmatmul.mubr.bf16.gmra.mrb[0].mxu0 %v97
  %v229 = vpop.f32.mrb[0].mxu0
  %v230 = vadd.f32 %v40, %v229
  %v231 = vpop.f32.mrb[0].mxu0
  %v232 = vadd.f32 %v44, %v231
  %v233 = vpop.f32.mrb[0].mxu0
  %v234 = vadd.f32 %v40, %v233
  %v235 = vpop.f32.mrb[0].mxu0
  %v236 = vadd.f32 %v44, %v235
  %237 = vmatprep.mubr.bf16.mxu0 0
  %238 = vmatmul.mubr.bf16.gmra.mrb[0].mxu0 %v100
  %v239 = vpop.f32.mrb[0].mxu0
  %v240 = vadd.f32 %v40, %v239
  %v241 = vpop.f32.mrb[0].mxu0
  %v242 = vadd.f32 %v44, %v241
  %v243 = vpop.f32.mrb[0].mxu0
  %v244 = vadd.f32 %v40, %v243
  %v245 = vpop.f32.mrb[0].mxu0
  %v246 = vadd.f32 %v44, %v245
  %247 = vdwg.mxu0
  %248 = vst [vmem:[%s3] sm:$0xff] %v137
  %249 = vst [vmem:[%s3 + $0x8] sm:$0xff] %v139
  %250 = vst [vmem:[%s3 + $0x10] sm:$0xff] %v210
  %251 = vst [vmem:[%s3 + $0x18] sm:$0xff] %v212
  %252 = vst [vmem:[%s3 + $0x20] sm:$0xff] %v141
  %253 = vst [vmem:[%s3 + $0x28] sm:$0xff] %v143
  %254 = vst [vmem:[%s3 + $0x30] sm:$0xff] %v214
  %255 = vst [vmem:[%s3 + $0x38] sm:$0xff] %v216
  %256 = vst [vmem:[%s3 + $0x40] sm:$0xff] %v147
  %257 = vst [vmem:[%s3 + $0x48] sm:$0xff] %v149
  %258 = vst [vmem:[%s3 + $0x50] sm:$0xff] %v220
  %259 = vst [vmem:[%s3 + $0x58] sm:$0xff] %v222
  %260 = vst [vmem:[%s3 + $0x60] sm:$0xff] %v151
  %261 = vst [vmem:[%s3 + $0x68] sm:$0xff] %v153
  %262 = vst [vmem:[%s3 + $0x70] sm:$0xff] %v224
  %263 = vst [vmem:[%s3 + $0x78] sm:$0xff] %v226
  %264 = vst [vmem:[%s3 + $0x80] sm:$0xff] %v157
  %265 = vst [vmem:[%s3 + $0x88] sm:$0xff] %v159
  %266 = vst [vmem:[%s3 + $0x90] sm:$0xff] %v230
  %267 = vst [vmem:[%s3 + $0x98] sm:$0xff] %v232
  %268 = vst [vmem:[%s3 + $0xa0] sm:$0xff] %v161
  %269 = vst [vmem:[%s3 + $0xa8] sm:$0xff] %v163
  %270 = vst [vmem:[%s3 + $0xb0] sm:$0xff] %v234
  %271 = vst [vmem:[%s3 + $0xb8] sm:$0xff] %v236
  %272 = vst [vmem:[%s3 + $0xc0] sm:$0xff] %v167
  %273 = vst [vmem:[%s3 + $0xc8] sm:$0xff] %v169
  %274 = vst [vmem:[%s3 + $0xd0] sm:$0xff] %v240
  %275 = vst [vmem:[%s3 + $0xd8] sm:$0xff] %v242
  %276 = vst [vmem:[%s3 + $0xe0] sm:$0xff] %v171
  %277 = vst [vmem:[%s3 + $0xe8] sm:$0xff] %v173
  %278 = vst [vmem:[%s3 + $0xf0] sm:$0xff] %v244
  %279 = vst [vmem:[%s3 + $0xf8] sm:$0xff] %v246
  // Predicated region
  $region14: #{lstm_forward.2} parent=0 // pred_check
    _
  $region15: #{lstm_forward.2} parent=0 // pred_check_branch
    %281 = sbr.rel (0) target = $region17
  $region16: #{lstm_forward.2} parent=0 // pred_region
    _
  $region17: #{lstm_forward.2} parent=0 // pred_fallthru
    _
  // Predicated region
  $region18: #{lstm_forward.2} parent=0 // pred_check
    _
  $region19: #{lstm_forward.2} parent=0 // pred_check_branch
    %283 = sbr.rel (0) target = $region21
  $region20: #{lstm_forward.2} parent=0 // pred_region
    _
  $region21: #{lstm_forward.2} parent=0 // pred_fallthru
    _

// kernel: lstm_forward.3
$region0: #{lstm_forward.3}
  #allocation0 [shape = 'u32[]', space=smem, size = 0x4, offset = 0x4, fixed_abs, tag = 'smem constant byte address 0x4 - core index']
  #allocation1 [shape = 'u32[144,128]{1,0:T(1,128)}', space=vmem, size = 0x12000, scoped, tag = 'internal scratch']
  #allocation2 [shape = 'f32[8,128]{1,0:T(8,128)}', space=vmem, size = 0x1000, scoped, tag = 'scratch operand']
  #allocation3 [shape = 'f32[8,128]{1,0:T(8,128)}', space=vmem, size = 0x1000, scoped, tag = 'scratch operand']
  %s0 = inlined_call_operand.vmem [shape: f32[8,8,512], index: 0, kind: input, shape index: {}]
  %s1 = inlined_call_operand.vmem [shape: bf16[128,512], index: 1, kind: input, shape index: {}]
  %s2 = inlined_call_operand.vmem [shape: f32[8,128], index: 2, kind: output, shape index: {}]
  %s3 = sld [smem:[#allocation0]]
  $region26: #{lstm_forward.3} parent=0
    _
  %s5 = ssub.s32 1, %s3
  %s6 = scalar_select 0, %s5, %s3
  // Predicated region
  $region2: #{lstm_forward.3} parent=0 // pred_check
    _
  $region3: #{lstm_forward.3} parent=0 // pred_check_branch
    %8 = sbr.rel (0) target = $region5
  $region4: #{lstm_forward.3} parent=0 // pred_region
    _
  $region5: #{lstm_forward.3} parent=0 // pred_fallthru
    _
  // Predicated region
  $region6: #{lstm_forward.3} parent=0 // pred_check
    _
  $region7: #{lstm_forward.3} parent=0 // pred_check_branch
    %10 = sbr.rel (0) target = $region9
  $region8: #{lstm_forward.3} parent=0 // pred_region
    _
  $region9: #{lstm_forward.3} parent=0 // pred_fallthru
    _
  %p12 = scmp.eq.s32.totalorder 0, 0
  // Predicated region
  $region10: #{lstm_forward.3} parent=0 // pred_check
    %p13 = pneg %p12
  $region11: #{lstm_forward.3} parent=0 // pred_check_branch
    %15 = sbr.rel (%p13) target = $region13
  $region12: #{lstm_forward.3} parent=0 // pred_region
    %16 = vst [vmem:[#allocation2] sm:$0xff] 0.0
    %17 = vst [vmem:[#allocation3] sm:$0xff] 0.0
  $region13: #{lstm_forward.3} parent=0 // pred_fallthru
    _
  %v18 = vld [vmem:[%s1] sm:$0xff]
  %v19 = vld [vmem:[%s1 + $0x8] sm:$0xff]
  %v20 = vld [vmem:[%s1 + $0x10] sm:$0xff]
  %v21 = vld [vmem:[%s1 + $0x18] sm:$0xff]
  %v22 = vld [vmem:[%s1 + $0x20] sm:$0xff]
  %v23 = vld [vmem:[%s1 + $0x28] sm:$0xff]
  %v24 = vld [vmem:[%s1 + $0x30] sm:$0xff]
  %v25 = vld [vmem:[%s1 + $0x38] sm:$0xff]
  %v26 = vld [vmem:[%s1 + $0x40] sm:$0xff]
  %v27 = vld [vmem:[%s1 + $0x48] sm:$0xff]
  %v28 = vld [vmem:[%s1 + $0x50] sm:$0xff]
  %v29 = vld [vmem:[%s1 + $0x58] sm:$0xff]
  %v30 = vld [vmem:[%s1 + $0x60] sm:$0xff]
  %v31 = vld [vmem:[%s1 + $0x68] sm:$0xff]
  %v32 = vld [vmem:[%s1 + $0x70] sm:$0xff]
  %v33 = vld [vmem:[%s1 + $0x78] sm:$0xff]
  %v34 = vld [vmem:[%s1 + $0x80] sm:$0xff]
  %v35 = vld [vmem:[%s1 + $0x88] sm:$0xff]
  %v36 = vld [vmem:[%s1 + $0x90] sm:$0xff]
  %v37 = vld [vmem:[%s1 + $0x98] sm:$0xff]
  %v38 = vld [vmem:[%s1 + $0xa0] sm:$0xff]
  %v39 = vld [vmem:[%s1 + $0xa8] sm:$0xff]
  %v40 = vld [vmem:[%s1 + $0xb0] sm:$0xff]
  %v41 = vld [vmem:[%s1 + $0xb8] sm:$0xff]
  %v42 = vld [vmem:[%s1 + $0xc0] sm:$0xff]
  %v43 = vld [vmem:[%s1 + $0xc8] sm:$0xff]
  %v44 = vld [vmem:[%s1 + $0xd0] sm:$0xff]
  %v45 = vld [vmem:[%s1 + $0xd8] sm:$0xff]
  %v46 = vld [vmem:[%s1 + $0xe0] sm:$0xff]
  %v47 = vld [vmem:[%s1 + $0xe8] sm:$0xff]
  %v48 = vld [vmem:[%s1 + $0xf0] sm:$0xff]
  %v49 = vld [vmem:[%s1 + $0xf8] sm:$0xff]
  %v50 = vld [vmem:[#allocation2] sm:$0xff]
  %v51 = vld [vmem:[#allocation3] sm:$0xff]
  %v52 = vld [vmem:[%s0] sm:$0xff]
  %v53 = vld [vmem:[%s0 + $0x8] sm:$0xff]
  %v54 = vld [vmem:[%s0 + $0x10] sm:$0xff]
  %v55 = vld [vmem:[%s0 + $0x18] sm:$0xff]
  %v56 = vpack.c.bf16 %v50, %v50
  %v89 = vunpack.c.l.b16 %v18
  %v90 = vunpack.c.h.b16 %v18
  %v91 = vunpack.c.l.b16 %v19
  %v92 = vunpack.c.h.b16 %v19
  %v93 = vunpack.c.l.b16 %v20
  %v94 = vunpack.c.h.b16 %v20
  %v95 = vunpack.c.l.b16 %v21
  %v96 = vunpack.c.h.b16 %v21
  %v97 = vunpack.c.l.b16 %v22
  %v98 = vunpack.c.h.b16 %v22
  %v99 = vunpack.c.l.b16 %v23
  %v100 = vunpack.c.h.b16 %v23
  %v101 = vunpack.c.l.b16 %v24
  %v102 = vunpack.c.h.b16 %v24
  %v103 = vunpack.c.l.b16 %v25
  %v104 = vunpack.c.h.b16 %v25
  %v105 = vunpack.c.l.b16 %v26
  %v106 = vunpack.c.h.b16 %v26
  %v107 = vunpack.c.l.b16 %v27
  %v108 = vunpack.c.h.b16 %v27
  %v109 = vunpack.c.l.b16 %v28
  %v110 = vunpack.c.h.b16 %v28
  %v111 = vunpack.c.l.b16 %v29
  %v112 = vunpack.c.h.b16 %v29
  %v113 = vunpack.c.l.b16 %v30
  %v114 = vunpack.c.h.b16 %v30
  %v115 = vunpack.c.l.b16 %v31
  %v116 = vunpack.c.h.b16 %v31
  %v117 = vunpack.c.l.b16 %v32
  %v118 = vunpack.c.h.b16 %v32
  %v119 = vunpack.c.l.b16 %v33
  %v120 = vunpack.c.h.b16 %v33
  %v121 = vunpack.c.l.b16 %v34
  %v122 = vunpack.c.h.b16 %v34
  %v123 = vunpack.c.l.b16 %v35
  %v124 = vunpack.c.h.b16 %v35
  %v125 = vunpack.c.l.b16 %v36
  %v126 = vunpack.c.h.b16 %v36
  %v127 = vunpack.c.l.b16 %v37
  %v128 = vunpack.c.h.b16 %v37
  %v129 = vunpack.c.l.b16 %v38
  %v130 = vunpack.c.h.b16 %v38
  %v131 = vunpack.c.l.b16 %v39
  %v132 = vunpack.c.h.b16 %v39
  %v133 = vunpack.c.l.b16 %v40
  %v134 = vunpack.c.h.b16 %v40
  %v135 = vunpack.c.l.b16 %v41
  %v136 = vunpack.c.h.b16 %v41
  %v137 = vunpack.c.l.b16 %v42
  %v138 = vunpack.c.h.b16 %v42
  %v139 = vunpack.c.l.b16 %v43
  %v140 = vunpack.c.h.b16 %v43
  %v141 = vunpack.c.l.b16 %v44
  %v142 = vunpack.c.h.b16 %v44
  %v143 = vunpack.c.l.b16 %v45
  %v144 = vunpack.c.h.b16 %v45
  %v145 = vunpack.c.l.b16 %v46
  %v146 = vunpack.c.h.b16 %v46
  %v147 = vunpack.c.l.b16 %v47
  %v148 = vunpack.c.h.b16 %v47
  %v149 = vunpack.c.l.b16 %v48
  %v150 = vunpack.c.h.b16 %v48
  %v151 = vunpack.c.l.b16 %v49
  %v152 = vunpack.c.h.b16 %v49
  %v153 = vpack.c.b16 %v93, %v89
  %v154 = vpack.c.b16 %v94, %v90
  %v155 = vpack.c.b16 %v95, %v91
  %v156 = vpack.c.b16 %v96, %v92
  %v157 = vpack.c.b16 %v101, %v97
  %v158 = vpack.c.b16 %v102, %v98
  %v159 = vpack.c.b16 %v103, %v99
  %v160 = vpack.c.b16 %v104, %v100
  %v161 = vpack.c.b16 %v109, %v105
  %v162 = vpack.c.b16 %v110, %v106
  %v163 = vpack.c.b16 %v111, %v107
  %v164 = vpack.c.b16 %v112, %v108
  %v165 = vpack.c.b16 %v117, %v113
  %v166 = vpack.c.b16 %v118, %v114
  %v167 = vpack.c.b16 %v119, %v115
  %v168 = vpack.c.b16 %v120, %v116
  %v169 = vpack.c.b16 %v125, %v121
  %v170 = vpack.c.b16 %v126, %v122
  %v171 = vpack.c.b16 %v127, %v123
  %v172 = vpack.c.b16 %v128, %v124
  %v173 = vpack.c.b16 %v133, %v129
  %v174 = vpack.c.b16 %v134, %v130
  %v175 = vpack.c.b16 %v135, %v131
  %v176 = vpack.c.b16 %v136, %v132
  %v177 = vpack.c.b16 %v141, %v137
  %v178 = vpack.c.b16 %v142, %v138
  %v179 = vpack.c.b16 %v143, %v139
  %v180 = vpack.c.b16 %v144, %v140
  %v181 = vpack.c.b16 %v149, %v145
  %v182 = vpack.c.b16 %v150, %v146
  %v183 = vpack.c.b16 %v151, %v147
  %v184 = vpack.c.b16 %v152, %v148
  %217 = vmatprep.subr.bf16.mxu0 %v154
  %218 = vmatpush1.bf16.msra.mxu0 %v153
  %219 = vmatprep.subr.bf16.mxu0 %v158
  %220 = vmatpush1.bf16.msra.mxu0 %v157
  %221 = vmatprep.subr.bf16.mxu0 %v162
  %222 = vmatpush1.bf16.msra.mxu0 %v161
  %223 = vmatprep.subr.bf16.mxu0 %v166
  %224 = vmatpush1.bf16.msra.mxu0 %v165
  %225 = vmatprep.subr.bf16.mxu0 %v170
  %226 = vmatpush1.bf16.msra.mxu0 %v169
  %227 = vmatprep.subr.bf16.mxu0 %v174
  %228 = vmatpush1.bf16.msra.mxu0 %v173
  %229 = vmatprep.subr.bf16.mxu0 %v178
  %230 = vmatpush1.bf16.msra.mxu0 %v177
  %231 = vmatprep.subr.bf16.mxu0 %v182
  %232 = vmatpush1.bf16.msra.mxu0 %v181
  %233 = vmatprep.subr.bf16.mxu0 0
  %234 = vmatpush1.bf16.msra.mxu0 0
  %235 = vmatprep.subr.bf16.mxu0 0
  %236 = vmatpush1.bf16.msra.mxu0 0
  %237 = vmatprep.subr.bf16.mxu0 0
  %238 = vmatpush1.bf16.msra.mxu0 0
  %239 = vmatprep.subr.bf16.mxu0 0
  %240 = vmatpush1.bf16.msra.mxu0 0
  %241 = vmatprep.subr.bf16.mxu0 0
  %242 = vmatpush1.bf16.msra.mxu0 0
  %243 = vmatprep.subr.bf16.mxu0 0
  %244 = vmatpush1.bf16.msra.mxu0 0
  %245 = vmatprep.subr.bf16.mxu0 0
  %246 = vmatpush1.bf16.msra.mxu0 0
  %247 = vmatprep.subr.bf16.mxu0 0
  %248 = vmatpush1.bf16.msra.mxu0 0
  %249 = vmatprep.mubr.bf16.mxu0 0
  %250 = vmatmul.mubr.bf16.gmra.mrb[0].mxu0 %v56
  %v251 = vpop.f32.mrb[0].mxu0
  %v252 = vadd.f32 0.0, %v251
  %v253 = vpop.f32.mrb[0].mxu0
  %v254 = vadd.f32 0.0, %v253
  %v255 = vpop.f32.mrb[0].mxu0
  %v256 = vpop.f32.mrb[0].mxu0
  %257 = vdwg.mxu0
  %258 = vmatprep.subr.bf16.mxu0 %v156
  %259 = vmatpush1.bf16.msra.mxu0 %v155
  %260 = vmatprep.subr.bf16.mxu0 %v160
  %261 = vmatpush1.bf16.msra.mxu0 %v159
  %262 = vmatprep.subr.bf16.mxu0 %v164
  %263 = vmatpush1.bf16.msra.mxu0 %v163
  %264 = vmatprep.subr.bf16.mxu0 %v168
  %265 = vmatpush1.bf16.msra.mxu0 %v167
  %266 = vmatprep.subr.bf16.mxu0 %v172
  %267 = vmatpush1.bf16.msra.mxu0 %v171
  %268 = vmatprep.subr.bf16.mxu0 %v176
  %269 = vmatpush1.bf16.msra.mxu0 %v175
  %270 = vmatprep.subr.bf16.mxu0 %v180
  %271 = vmatpush1.bf16.msra.mxu0 %v179
  %272 = vmatprep.subr.bf16.mxu0 %v184
  %273 = vmatpush1.bf16.msra.mxu0 %v183
  %274 = vmatprep.subr.bf16.mxu0 0
  %275 = vmatpush1.bf16.msra.mxu0 0
  %276 = vmatprep.subr.bf16.mxu0 0
  %277 = vmatpush1.bf16.msra.mxu0 0
  %278 = vmatprep.subr.bf16.mxu0 0
  %279 = vmatpush1.bf16.msra.mxu0 0
  %280 = vmatprep.subr.bf16.mxu0 0
  %281 = vmatpush1.bf16.msra.mxu0 0
  %282 = vmatprep.subr.bf16.mxu0 0
  %283 = vmatpush1.bf16.msra.mxu0 0
  %284 = vmatprep.subr.bf16.mxu0 0
  %285 = vmatpush1.bf16.msra.mxu0 0
  %286 = vmatprep.subr.bf16.mxu0 0
  %287 = vmatpush1.bf16.msra.mxu0 0
  %288 = vmatprep.subr.bf16.mxu0 0
  %289 = vmatpush1.bf16.msra.mxu0 0
  %290 = vmatprep.mubr.bf16.mxu0 0
  %291 = vmatmul.mubr.bf16.gmra.mrb[0].mxu0 %v56
  %v292 = vpop.f32.mrb[0].mxu0
  %v293 = vadd.f32 0.0, %v292
  %v294 = vpop.f32.mrb[0].mxu0
  %v295 = vadd.f32 0.0, %v294
  %v296 = vpop.f32.mrb[0].mxu0
  %v297 = vpop.f32.mrb[0].mxu0
  %298 = vdwg.mxu0
  %v299 = vadd.f32 %v52, %v252
  %v300 = vadd.f32 %v53, %v254
  %v301 = vadd.f32 %v54, %v293
  %v302 = vadd.f32 %v55, %v295
  %v303 = vxor.u32 %v299, 2147483648
  %v304 = vmul.f32 %v303, 1.442695
  %v305 = vpow.pop %v304
  %v306 = vadd.f32 %v305, 1.0
  %v307 = vrcp.pop %v306
  %v308 = vmul.f32 1.0, %v307
  %v309 = vxor.u32 %v300, 2147483648
  %v310 = vmul.f32 %v309, 1.442695
  %v311 = vpow.pop %v310
  %v312 = vadd.f32 %v311, 1.0
  %v313 = vrcp.pop %v312
  %v314 = vmul.f32 1.0, %v313
  %v315 = vxor.u32 %v301, 2147483648
  %v316 = vmul.f32 %v315, 1.442695
  %v317 = vpow.pop %v316
  %v318 = vadd.f32 %v317, 1.0
  %v319 = vrcp.pop %v318
  %v320 = vmul.f32 1.0, %v319
  %v321 = vtanh.pop %v302
  %v322 = vmul.f32 %v308, %v51
  %v323 = vmul.f32 %v314, %v321
  %v324 = vadd.f32 %v322, %v323
  %v325 = vtanh.pop %v324
  %v326 = vmul.f32 %v320, %v325
  %327 = vst [vmem:[#allocation3] sm:$0xff] %v324
  %328 = vst [vmem:[#allocation2] sm:$0xff] %v326
  %v329 = vld [vmem:[#allocation2] sm:$0xff]
  %v330 = vld [vmem:[#allocation3] sm:$0xff]
  %s331 = scalar_lea.vmem %s0, 32
  %v332 = vld [vmem:[%s331] sm:$0xff]
  %v333 = vld [vmem:[%s331 + $0x8] sm:$0xff]
  %v334 = vld [vmem:[%s331 + $0x10] sm:$0xff]
  %v335 = vld [vmem:[%s331 + $0x18] sm:$0xff]
  %v336 = vpack.c.bf16 %v329, %v329
  %337 = vmatprep.subr.bf16.mxu0 %v154
  %338 = vmatpush1.bf16.msra.mxu0 %v153
  %339 = vmatprep.subr.bf16.mxu0 %v158
  %340 = vmatpush1.bf16.msra.mxu0 %v157
  %341 = vmatprep.subr.bf16.mxu0 %v162
  %342 = vmatpush1.bf16.msra.mxu0 %v161
  %343 = vmatprep.subr.bf16.mxu0 %v166
  %344 = vmatpush1.bf16.msra.mxu0 %v165
  %345 = vmatprep.subr.bf16.mxu0 %v170
  %346 = vmatpush1.bf16.msra.mxu0 %v169
  %347 = vmatprep.subr.bf16.mxu0 %v174
  %348 = vmatpush1.bf16.msra.mxu0 %v173
  %349 = vmatprep.subr.bf16.mxu0 %v178
  %350 = vmatpush1.bf16.msra.mxu0 %v177
  %351 = vmatprep.subr.bf16.mxu0 %v182
  %352 = vmatpush1.bf16.msra.mxu0 %v181
  %353 = vmatprep.subr.bf16.mxu0 0
  %354 = vmatpush1.bf16.msra.mxu0 0
  %355 = vmatprep.subr.bf16.mxu0 0
  %356 = vmatpush1.bf16.msra.mxu0 0
  %357 = vmatprep.subr.bf16.mxu0 0
  %358 = vmatpush1.bf16.msra.mxu0 0
  %359 = vmatprep.subr.bf16.mxu0 0
  %360 = vmatpush1.bf16.msra.mxu0 0
  %361 = vmatprep.subr.bf16.mxu0 0
  %362 = vmatpush1.bf16.msra.mxu0 0
  %363 = vmatprep.subr.bf16.mxu0 0
  %364 = vmatpush1.bf16.msra.mxu0 0
  %365 = vmatprep.subr.bf16.mxu0 0
  %366 = vmatpush1.bf16.msra.mxu0 0
  %367 = vmatprep.subr.bf16.mxu0 0
  %368 = vmatpush1.bf16.msra.mxu0 0
  %369 = vmatprep.mubr.bf16.mxu0 0
  %370 = vmatmul.mubr.bf16.gmra.mrb[0].mxu0 %v336
  %v371 = vpop.f32.mrb[0].mxu0
  %v372 = vadd.f32 0.0, %v371
  %v373 = vpop.f32.mrb[0].mxu0
  %v374 = vadd.f32 0.0, %v373
  %v375 = vpop.f32.mrb[0].mxu0
  %v376 = vpop.f32.mrb[0].mxu0
  %377 = vdwg.mxu0
  %378 = vmatprep.subr.bf16.mxu0 %v156
  %379 = vmatpush1.bf16.msra.mxu0 %v155
  %380 = vmatprep.subr.bf16.mxu0 %v160
  %381 = vmatpush1.bf16.msra.mxu0 %v159
  %382 = vmatprep.subr.bf16.mxu0 %v164
  %383 = vmatpush1.bf16.msra.mxu0 %v163
  %384 = vmatprep.subr.bf16.mxu0 %v168
  %385 = vmatpush1.bf16.msra.mxu0 %v167
  %386 = vmatprep.subr.bf16.mxu0 %v172
  %387 = vmatpush1.bf16.msra.mxu0 %v171
  %388 = vmatprep.subr.bf16.mxu0 %v176
  %389 = vmatpush1.bf16.msra.mxu0 %v175
  %390 = vmatprep.subr.bf16.mxu0 %v180
  %391 = vmatpush1.bf16.msra.mxu0 %v179
  %392 = vmatprep.subr.bf16.mxu0 %v184
  %393 = vmatpush1.bf16.msra.mxu0 %v183
  %394 = vmatprep.subr.bf16.mxu0 0
  %395 = vmatpush1.bf16.msra.mxu0 0
  %396 = vmatprep.subr.bf16.mxu0 0
  %397 = vmatpush1.bf16.msra.mxu0 0
  %398 = vmatprep.subr.bf16.mxu0 0
  %399 = vmatpush1.bf16.msra.mxu0 0
  %400 = vmatprep.subr.bf16.mxu0 0
  %401 = vmatpush1.bf16.msra.mxu0 0
  %402 = vmatprep.subr.bf16.mxu0 0
  %403 = vmatpush1.bf16.msra.mxu0 0
  %404 = vmatprep.subr.bf16.mxu0 0
  %405 = vmatpush1.bf16.msra.mxu0 0
  %406 = vmatprep.subr.bf16.mxu0 0
  %407 = vmatpush1.bf16.msra.mxu0 0
  %408 = vmatprep.subr.bf16.mxu0 0
  %409 = vmatpush1.bf16.msra.mxu0 0
  %410 = vmatprep.mubr.bf16.mxu0 0
  %411 = vmatmul.mubr.bf16.gmra.mrb[0].mxu0 %v336
  %v412 = vpop.f32.mrb[0].mxu0
  %v413 = vadd.f32 0.0, %v412
  %v414 = vpop.f32.mrb[0].mxu0
  %v415 = vadd.f32 0.0, %v414
  %v416 = vpop.f32.mrb[0].mxu0
  %v417 = vpop.f32.mrb[0].mxu0
  %418 = vdwg.mxu0
  %v419 = vadd.f32 %v332, %v372
  %v420 = vadd.f32 %v333, %v374
  %v421 = vadd.f32 %v334, %v413
  %v422 = vadd.f32 %v335, %v415
  %v423 = vxor.u32 %v419, 2147483648
  %v424 = vmul.f32 %v423, 1.442695
  %v425 = vpow.pop %v424
  %v426 = vadd.f32 %v425, 1.0
  %v427 = vrcp.pop %v426
  %v428 = vmul.f32 1.0, %v427
  %v429 = vxor.u32 %v420, 2147483648
  %v430 = vmul.f32 %v429, 1.442695
  %v431 = vpow.pop %v430
  %v432 = vadd.f32 %v431, 1.0
  %v433 = vrcp.pop %v432
  %v434 = vmul.f32 1.0, %v433
  %v435 = vxor.u32 %v421, 2147483648
  %v436 = vmul.f32 %v435, 1.442695
  %v437 = vpow.pop %v436
  %v438 = vadd.f32 %v437, 1.0
  %v439 = vrcp.pop %v438
  %v440 = vmul.f32 1.0, %v439
  %v441 = vtanh.pop %v422
  %v442 = vmul.f32 %v428, %v330
  %v443 = vmul.f32 %v434, %v441
  %v444 = vadd.f32 %v442, %v443
  %v445 = vtanh.pop %v444
  %v446 = vmul.f32 %v440, %v445
  %447 = vst [vmem:[#allocation3] sm:$0xff] %v444
  %448 = vst [vmem:[#allocation2] sm:$0xff] %v446
  %v449 = vld [vmem:[#allocation2] sm:$0xff]
  %v450 = vld [vmem:[#allocation3] sm:$0xff]
  %s451 = scalar_lea.vmem %s0, 64
  %v452 = vld [vmem:[%s451] sm:$0xff]
  %v453 = vld [vmem:[%s451 + $0x8] sm:$0xff]
  %v454 = vld [vmem:[%s451 + $0x10] sm:$0xff]
  %v455 = vld [vmem:[%s451 + $0x18] sm:$0xff]
  %v456 = vpack.c.bf16 %v449, %v449
  %457 = vmatprep.subr.bf16.mxu0 %v154
  %458 = vmatpush1.bf16.msra.mxu0 %v153
  %459 = vmatprep.subr.bf16.mxu0 %v158
  %460 = vmatpush1.bf16.msra.mxu0 %v157
  %461 = vmatprep.subr.bf16.mxu0 %v162
  %462 = vmatpush1.bf16.msra.mxu0 %v161
  %463 = vmatprep.subr.bf16.mxu0 %v166
  %464 = vmatpush1.bf16.msra.mxu0 %v165
  %465 = vmatprep.subr.bf16.mxu0 %v170
  %466 = vmatpush1.bf16.msra.mxu0 %v169
  %467 = vmatprep.subr.bf16.mxu0 %v174
  %468 = vmatpush1.bf16.msra.mxu0 %v173
  %469 = vmatprep.subr.bf16.mxu0 %v178
  %470 = vmatpush1.bf16.msra.mxu0 %v177
  %471 = vmatprep.subr.bf16.mxu0 %v182
  %472 = vmatpush1.bf16.msra.mxu0 %v181
  %473 = vmatprep.subr.bf16.mxu0 0
  %474 = vmatpush1.bf16.msra.mxu0 0
  %475 = vmatprep.subr.bf16.mxu0 0
  %476 = vmatpush1.bf16.msra.mxu0 0
  %477 = vmatprep.subr.bf16.mxu0 0
  %478 = vmatpush1.bf16.msra.mxu0 0
  %479 = vmatprep.subr.bf16.mxu0 0
  %480 = vmatpush1.bf16.msra.mxu0 0
  %481 = vmatprep.subr.bf16.mxu0 0
  %482 = vmatpush1.bf16.msra.mxu0 0
  %483 = vmatprep.subr.bf16.mxu0 0
  %484 = vmatpush1.bf16.msra.mxu0 0
  %485 = vmatprep.subr.bf16.mxu0 0
  %486 = vmatpush1.bf16.msra.mxu0 0
  %487 = vmatprep.subr.bf16.mxu0 0
  %488 = vmatpush1.bf16.msra.mxu0 0
  %489 = vmatprep.mubr.bf16.mxu0 0
  %490 = vmatmul.mubr.bf16.gmra.mrb[0].mxu0 %v456
  %v491 = vpop.f32.mrb[0].mxu0
  %v492 = vadd.f32 0.0, %v491
  %v493 = vpop.f32.mrb[0].mxu0
  %v494 = vadd.f32 0.0, %v493
  %v495 = vpop.f32.mrb[0].mxu0
  %v496 = vpop.f32.mrb[0].mxu0
  %497 = vdwg.mxu0
  %498 = vmatprep.subr.bf16.mxu0 %v156
  %499 = vmatpush1.bf16.msra.mxu0 %v155
  %500 = vmatprep.subr.bf16.mxu0 %v160
  %501 = vmatpush1.bf16.msra.mxu0 %v159
  %502 = vmatprep.subr.bf16.mxu0 %v164
  %503 = vmatpush1.bf16.msra.mxu0 %v163
  %504 = vmatprep.subr.bf16.mxu0 %v168
  %505 = vmatpush1.bf16.msra.mxu0 %v167
  %506 = vmatprep.subr.bf16.mxu0 %v172
  %507 = vmatpush1.bf16.msra.mxu0 %v171
  %508 = vmatprep.subr.bf16.mxu0 %v176
  %509 = vmatpush1.bf16.msra.mxu0 %v175
  %510 = vmatprep.subr.bf16.mxu0 %v180
  %511 = vmatpush1.bf16.msra.mxu0 %v179
  %512 = vmatprep.subr.bf16.mxu0 %v184
  %513 = vmatpush1.bf16.msra.mxu0 %v183
  %514 = vmatprep.subr.bf16.mxu0 0
  %515 = vmatpush1.bf16.msra.mxu0 0
  %516 = vmatprep.subr.bf16.mxu0 0
  %517 = vmatpush1.bf16.msra.mxu0 0
  %518 = vmatprep.subr.bf16.mxu0 0
  %519 = vmatpush1.bf16.msra.mxu0 0
  %520 = vmatprep.subr.bf16.mxu0 0
  %521 = vmatpush1.bf16.msra.mxu0 0
  %522 = vmatprep.subr.bf16.mxu0 0
  %523 = vmatpush1.bf16.msra.mxu0 0
  %524 = vmatprep.subr.bf16.mxu0 0
  %525 = vmatpush1.bf16.msra.mxu0 0
  %526 = vmatprep.subr.bf16.mxu0 0
  %527 = vmatpush1.bf16.msra.mxu0 0
  %528 = vmatprep.subr.bf16.mxu0 0
  %529 = vmatpush1.bf16.msra.mxu0 0
  %530 = vmatprep.mubr.bf16.mxu0 0
  %531 = vmatmul.mubr.bf16.gmra.mrb[0].mxu0 %v456
  %v532 = vpop.f32.mrb[0].mxu0
  %v533 = vadd.f32 0.0, %v532
  %v534 = vpop.f32.mrb[0].mxu0
  %v535 = vadd.f32 0.0, %v534
  %v536 = vpop.f32.mrb[0].mxu0
  %v537 = vpop.f32.mrb[0].mxu0
  %538 = vdwg.mxu0
  %v539 = vadd.f32 %v452, %v492
  %v540 = vadd.f32 %v453, %v494
  %v541 = vadd.f32 %v454, %v533
  %v542 = vadd.f32 %v455, %v535
  %v543 = vxor.u32 %v539, 2147483648
  %v544 = vmul.f32 %v543, 1.442695
  %v545 = vpow.pop %v544
  %v546 = vadd.f32 %v545, 1.0
  %v547 = vrcp.pop %v546
  %v548 = vmul.f32 1.0, %v547
  %v549 = vxor.u32 %v540, 2147483648
  %v550 = vmul.f32 %v549, 1.442695
  %v551 = vpow.pop %v550
  %v552 = vadd.f32 %v551, 1.0
  %v553 = vrcp.pop %v552
  %v554 = vmul.f32 1.0, %v553
  %v555 = vxor.u32 %v541, 2147483648
  %v556 = vmul.f32 %v555, 1.442695
  %v557 = vpow.pop %v556
  %v558 = vadd.f32 %v557, 1.0
  %v559 = vrcp.pop %v558
  %v560 = vmul.f32 1.0, %v559
  %v561 = vtanh.pop %v542
  %v562 = vmul.f32 %v548, %v450
  %v563 = vmul.f32 %v554, %v561
  %v564 = vadd.f32 %v562, %v563
  %v565 = vtanh.pop %v564
  %v566 = vmul.f32 %v560, %v565
  %567 = vst [vmem:[#allocation3] sm:$0xff] %v564
  %568 = vst [vmem:[#allocation2] sm:$0xff] %v566
  %v569 = vld [vmem:[#allocation2] sm:$0xff]
  %v570 = vld [vmem:[#allocation3] sm:$0xff]
  %s571 = scalar_lea.vmem %s0, 96
  %v572 = vld [vmem:[%s571] sm:$0xff]
  %v573 = vld [vmem:[%s571 + $0x8] sm:$0xff]
  %v574 = vld [vmem:[%s571 + $0x10] sm:$0xff]
  %v575 = vld [vmem:[%s571 + $0x18] sm:$0xff]
  %v576 = vpack.c.bf16 %v569, %v569
  %577 = vmatprep.subr.bf16.mxu0 %v154
  %578 = vmatpush1.bf16.msra.mxu0 %v153
  %579 = vmatprep.subr.bf16.mxu0 %v158
  %580 = vmatpush1.bf16.msra.mxu0 %v157
  %581 = vmatprep.subr.bf16.mxu0 %v162
  %582 = vmatpush1.bf16.msra.mxu0 %v161
  %583 = vmatprep.subr.bf16.mxu0 %v166
  %584 = vmatpush1.bf16.msra.mxu0 %v165
  %585 = vmatprep.subr.bf16.mxu0 %v170
  %586 = vmatpush1.bf16.msra.mxu0 %v169
  %587 = vmatprep.subr.bf16.mxu0 %v174
  %588 = vmatpush1.bf16.msra.mxu0 %v173
  %589 = vmatprep.subr.bf16.mxu0 %v178
  %590 = vmatpush1.bf16.msra.mxu0 %v177
  %591 = vmatprep.subr.bf16.mxu0 %v182
  %592 = vmatpush1.bf16.msra.mxu0 %v181
  %593 = vmatprep.subr.bf16.mxu0 0
  %594 = vmatpush1.bf16.msra.mxu0 0
  %595 = vmatprep.subr.bf16.mxu0 0
  %596 = vmatpush1.bf16.msra.mxu0 0
  %597 = vmatprep.subr.bf16.mxu0 0
  %598 = vmatpush1.bf16.msra.mxu0 0
  %599 = vmatprep.subr.bf16.mxu0 0
  %600 = vmatpush1.bf16.msra.mxu0 0
  %601 = vmatprep.subr.bf16.mxu0 0
  %602 = vmatpush1.bf16.msra.mxu0 0
  %603 = vmatprep.subr.bf16.mxu0 0
  %604 = vmatpush1.bf16.msra.mxu0 0
  %605 = vmatprep.subr.bf16.mxu0 0
  %606 = vmatpush1.bf16.msra.mxu0 0
  %607 = vmatprep.subr.bf16.mxu0 0
  %608 = vmatpush1.bf16.msra.mxu0 0
  %609 = vmatprep.mubr.bf16.mxu0 0
  %610 = vmatmul.mubr.bf16.gmra.mrb[0].mxu0 %v576
  %v611 = vpop.f32.mrb[0].mxu0
  %v612 = vadd.f32 0.0, %v611
  %v613 = vpop.f32.mrb[0].mxu0
  %v614 = vadd.f32 0.0, %v613
  %v615 = vpop.f32.mrb[0].mxu0
  %v616 = vpop.f32.mrb[0].mxu0
  %617 = vdwg.mxu0
  %618 = vmatprep.subr.bf16.mxu0 %v156
  %619 = vmatpush1.bf16.msra.mxu0 %v155
  %620 = vmatprep.subr.bf16.mxu0 %v160
  %621 = vmatpush1.bf16.msra.mxu0 %v159
  %622 = vmatprep.subr.bf16.mxu0 %v164
  %623 = vmatpush1.bf16.msra.mxu0 %v163
  %624 = vmatprep.subr.bf16.mxu0 %v168
  %625 = vmatpush1.bf16.msra.mxu0 %v167
  %626 = vmatprep.subr.bf16.mxu0 %v172
  %627 = vmatpush1.bf16.msra.mxu0 %v171
  %628 = vmatprep.subr.bf16.mxu0 %v176
  %629 = vmatpush1.bf16.msra.mxu0 %v175
  %630 = vmatprep.subr.bf16.mxu0 %v180
  %631 = vmatpush1.bf16.msra.mxu0 %v179
  %632 = vmatprep.subr.bf16.mxu0 %v184
  %633 = vmatpush1.bf16.msra.mxu0 %v183
  %634 = vmatprep.subr.bf16.mxu0 0
  %635 = vmatpush1.bf16.msra.mxu0 0
  %636 = vmatprep.subr.bf16.mxu0 0
  %637 = vmatpush1.bf16.msra.mxu0 0
  %638 = vmatprep.subr.bf16.mxu0 0
  %639 = vmatpush1.bf16.msra.mxu0 0
  %640 = vmatprep.subr.bf16.mxu0 0
  %641 = vmatpush1.bf16.msra.mxu0 0
  %642 = vmatprep.subr.bf16.mxu0 0
  %643 = vmatpush1.bf16.msra.mxu0 0
  %644 = vmatprep.subr.bf16.mxu0 0
  %645 = vmatpush1.bf16.msra.mxu0 0
  %646 = vmatprep.subr.bf16.mxu0 0
  %647 = vmatpush1.bf16.msra.mxu0 0
  %648 = vmatprep.subr.bf16.mxu0 0
  %649 = vmatpush1.bf16.msra.mxu0 0
  %650 = vmatprep.mubr.bf16.mxu0 0
  %651 = vmatmul.mubr.bf16.gmra.mrb[0].mxu0 %v576
  %v652 = vpop.f32.mrb[0].mxu0
  %v653 = vadd.f32 0.0, %v652
  %v654 = vpop.f32.mrb[0].mxu0
  %v655 = vadd.f32 0.0, %v654
  %v656 = vpop.f32.mrb[0].mxu0
  %v657 = vpop.f32.mrb[0].mxu0
  %658 = vdwg.mxu0
  %v659 = vadd.f32 %v572, %v612
  %v660 = vadd.f32 %v573, %v614
  %v661 = vadd.f32 %v574, %v653
  %v662 = vadd.f32 %v575, %v655
  %v663 = vxor.u32 %v659, 2147483648
  %v664 = vmul.f32 %v663, 1.442695
  %v665 = vpow.pop %v664
  %v666 = vadd.f32 %v665, 1.0
  %v667 = vrcp.pop %v666
  %v668 = vmul.f32 1.0, %v667
  %v669 = vxor.u32 %v660, 2147483648
  %v670 = vmul.f32 %v669, 1.442695
  %v671 = vpow.pop %v670
  %v672 = vadd.f32 %v671, 1.0
  %v673 = vrcp.pop %v672
  %v674 = vmul.f32 1.0, %v673
  %v675 = vxor.u32 %v661, 2147483648
  %v676 = vmul.f32 %v675, 1.442695
  %v677 = vpow.pop %v676
  %v678 = vadd.f32 %v677, 1.0
  %v679 = vrcp.pop %v678
  %v680 = vmul.f32 1.0, %v679
  %v681 = vtanh.pop %v662
  %v682 = vmul.f32 %v668, %v570
  %v683 = vmul.f32 %v674, %v681
  %v684 = vadd.f32 %v682, %v683
  %v685 = vtanh.pop %v684
  %v686 = vmul.f32 %v680, %v685
  %687 = vst [vmem:[#allocation3] sm:$0xff] %v684
  %688 = vst [vmem:[#allocation2] sm:$0xff] %v686
  %v689 = vld [vmem:[#allocation2] sm:$0xff]
  %v690 = vld [vmem:[#allocation3] sm:$0xff]
  %s691 = scalar_lea.vmem %s0, 128
  %v692 = vld [vmem:[%s691] sm:$0xff]
  %v693 = vld [vmem:[%s691 + $0x8] sm:$0xff]
  %v694 = vld [vmem:[%s691 + $0x10] sm:$0xff]
  %v695 = vld [vmem:[%s691 + $0x18] sm:$0xff]
  %v696 = vpack.c.bf16 %v689, %v689
  %697 = vmatprep.subr.bf16.mxu0 %v154
  %698 = vmatpush1.bf16.msra.mxu0 %v153
  %699 = vmatprep.subr.bf16.mxu0 %v158
  %700 = vmatpush1.bf16.msra.mxu0 %v157
  %701 = vmatprep.subr.bf16.mxu0 %v162
  %702 = vmatpush1.bf16.msra.mxu0 %v161
  %703 = vmatprep.subr.bf16.mxu0 %v166
  %704 = vmatpush1.bf16.msra.mxu0 %v165
  %705 = vmatprep.subr.bf16.mxu0 %v170
  %706 = vmatpush1.bf16.msra.mxu0 %v169
  %707 = vmatprep.subr.bf16.mxu0 %v174
  %708 = vmatpush1.bf16.msra.mxu0 %v173
  %709 = vmatprep.subr.bf16.mxu0 %v178
  %710 = vmatpush1.bf16.msra.mxu0 %v177
  %711 = vmatprep.subr.bf16.mxu0 %v182
  %712 = vmatpush1.bf16.msra.mxu0 %v181
  %713 = vmatprep.subr.bf16.mxu0 0
  %714 = vmatpush1.bf16.msra.mxu0 0
  %715 = vmatprep.subr.bf16.mxu0 0
  %716 = vmatpush1.bf16.msra.mxu0 0
  %717 = vmatprep.subr.bf16.mxu0 0
  %718 = vmatpush1.bf16.msra.mxu0 0
  %719 = vmatprep.subr.bf16.mxu0 0
  %720 = vmatpush1.bf16.msra.mxu0 0
  %721 = vmatprep.subr.bf16.mxu0 0
  %722 = vmatpush1.bf16.msra.mxu0 0
  %723 = vmatprep.subr.bf16.mxu0 0
  %724 = vmatpush1.bf16.msra.mxu0 0
  %725 = vmatprep.subr.bf16.mxu0 0
  %726 = vmatpush1.bf16.msra.mxu0 0
  %727 = vmatprep.subr.bf16.mxu0 0
  %728 = vmatpush1.bf16.msra.mxu0 0
  %729 = vmatprep.mubr.bf16.mxu0 0
  %730 = vmatmul.mubr.bf16.gmra.mrb[0].mxu0 %v696
  %v731 = vpop.f32.mrb[0].mxu0
  %v732 = vadd.f32 0.0, %v731
  %v733 = vpop.f32.mrb[0].mxu0
  %v734 = vadd.f32 0.0, %v733
  %v735 = vpop.f32.mrb[0].mxu0
  %v736 = vpop.f32.mrb[0].mxu0
  %737 = vdwg.mxu0
  %738 = vmatprep.subr.bf16.mxu0 %v156
  %739 = vmatpush1.bf16.msra.mxu0 %v155
  %740 = vmatprep.subr.bf16.mxu0 %v160
  %741 = vmatpush1.bf16.msra.mxu0 %v159
  %742 = vmatprep.subr.bf16.mxu0 %v164
  %743 = vmatpush1.bf16.msra.mxu0 %v163
  %744 = vmatprep.subr.bf16.mxu0 %v168
  %745 = vmatpush1.bf16.msra.mxu0 %v167
  %746 = vmatprep.subr.bf16.mxu0 %v172
  %747 = vmatpush1.bf16.msra.mxu0 %v171
  %748 = vmatprep.subr.bf16.mxu0 %v176
  %749 = vmatpush1.bf16.msra.mxu0 %v175
  %750 = vmatprep.subr.bf16.mxu0 %v180
  %751 = vmatpush1.bf16.msra.mxu0 %v179
  %752 = vmatprep.subr.bf16.mxu0 %v184
  %753 = vmatpush1.bf16.msra.mxu0 %v183
  %754 = vmatprep.subr.bf16.mxu0 0
  %755 = vmatpush1.bf16.msra.mxu0 0
  %756 = vmatprep.subr.bf16.mxu0 0
  %757 = vmatpush1.bf16.msra.mxu0 0
  %758 = vmatprep.subr.bf16.mxu0 0
  %759 = vmatpush1.bf16.msra.mxu0 0
  %760 = vmatprep.subr.bf16.mxu0 0
  %761 = vmatpush1.bf16.msra.mxu0 0
  %762 = vmatprep.subr.bf16.mxu0 0
  %763 = vmatpush1.bf16.msra.mxu0 0
  %764 = vmatprep.subr.bf16.mxu0 0
  %765 = vmatpush1.bf16.msra.mxu0 0
  %766 = vmatprep.subr.bf16.mxu0 0
  %767 = vmatpush1.bf16.msra.mxu0 0
  %768 = vmatprep.subr.bf16.mxu0 0
  %769 = vmatpush1.bf16.msra.mxu0 0
  %770 = vmatprep.mubr.bf16.mxu0 0
  %771 = vmatmul.mubr.bf16.gmra.mrb[0].mxu0 %v696
  %v772 = vpop.f32.mrb[0].mxu0
  %v773 = vadd.f32 0.0, %v772
  %v774 = vpop.f32.mrb[0].mxu0
  %v775 = vadd.f32 0.0, %v774
  %v776 = vpop.f32.mrb[0].mxu0
  %v777 = vpop.f32.mrb[0].mxu0
  %778 = vdwg.mxu0
  %v779 = vadd.f32 %v692, %v732
  %v780 = vadd.f32 %v693, %v734
  %v781 = vadd.f32 %v694, %v773
  %v782 = vadd.f32 %v695, %v775
  %v783 = vxor.u32 %v779, 2147483648
  %v784 = vmul.f32 %v783, 1.442695
  %v785 = vpow.pop %v784
  %v786 = vadd.f32 %v785, 1.0
  %v787 = vrcp.pop %v786
  %v788 = vmul.f32 1.0, %v787
  %v789 = vxor.u32 %v780, 2147483648
  %v790 = vmul.f32 %v789, 1.442695
  %v791 = vpow.pop %v790
  %v792 = vadd.f32 %v791, 1.0
  %v793 = vrcp.pop %v792
  %v794 = vmul.f32 1.0, %v793
  %v795 = vxor.u32 %v781, 2147483648
  %v796 = vmul.f32 %v795, 1.442695
  %v797 = vpow.pop %v796
  %v798 = vadd.f32 %v797, 1.0
  %v799 = vrcp.pop %v798
  %v800 = vmul.f32 1.0, %v799
  %v801 = vtanh.pop %v782
  %v802 = vmul.f32 %v788, %v690
  %v803 = vmul.f32 %v794, %v801
  %v804 = vadd.f32 %v802, %v803
  %v805 = vtanh.pop %v804
  %v806 = vmul.f32 %v800, %v805
  %807 = vst [vmem:[#allocation3] sm:$0xff] %v804
  %808 = vst [vmem:[#allocation2] sm:$0xff] %v806
  %v809 = vld [vmem:[#allocation2] sm:$0xff]
  %v810 = vld [vmem:[#allocation3] sm:$0xff]
  %s811 = scalar_lea.vmem %s0, 160
  %v812 = vld [vmem:[%s811] sm:$0xff]
  %v813 = vld [vmem:[%s811 + $0x8] sm:$0xff]
  %v814 = vld [vmem:[%s811 + $0x10] sm:$0xff]
  %v815 = vld [vmem:[%s811 + $0x18] sm:$0xff]
  %v816 = vpack.c.bf16 %v809, %v809
  %817 = vmatprep.subr.bf16.mxu0 %v154
  %818 = vmatpush1.bf16.msra.mxu0 %v153
  %819 = vmatprep.subr.bf16.mxu0 %v158
  %820 = vmatpush1.bf16.msra.mxu0 %v157
  %821 = vmatprep.subr.bf16.mxu0 %v162
  %822 = vmatpush1.bf16.msra.mxu0 %v161
  %823 = vmatprep.subr.bf16.mxu0 %v166
  %824 = vmatpush1.bf16.msra.mxu0 %v165
  %825 = vmatprep.subr.bf16.mxu0 %v170
  %826 = vmatpush1.bf16.msra.mxu0 %v169
  %827 = vmatprep.subr.bf16.mxu0 %v174
  %828 = vmatpush1.bf16.msra.mxu0 %v173
  %829 = vmatprep.subr.bf16.mxu0 %v178
  %830 = vmatpush1.bf16.msra.mxu0 %v177
  %831 = vmatprep.subr.bf16.mxu0 %v182
  %832 = vmatpush1.bf16.msra.mxu0 %v181
  %833 = vmatprep.subr.bf16.mxu0 0
  %834 = vmatpush1.bf16.msra.mxu0 0
  %835 = vmatprep.subr.bf16.mxu0 0
  %836 = vmatpush1.bf16.msra.mxu0 0
  %837 = vmatprep.subr.bf16.mxu0 0
  %838 = vmatpush1.bf16.msra.mxu0 0
  %839 = vmatprep.subr.bf16.mxu0 0
  %840 = vmatpush1.bf16.msra.mxu0 0
  %841 = vmatprep.subr.bf16.mxu0 0
  %842 = vmatpush1.bf16.msra.mxu0 0
  %843 = vmatprep.subr.bf16.mxu0 0
  %844 = vmatpush1.bf16.msra.mxu0 0
  %845 = vmatprep.subr.bf16.mxu0 0
  %846 = vmatpush1.bf16.msra.mxu0 0
  %847 = vmatprep.subr.bf16.mxu0 0
  %848 = vmatpush1.bf16.msra.mxu0 0
  %849 = vmatprep.mubr.bf16.mxu0 0
  %850 = vmatmul.mubr.bf16.gmra.mrb[0].mxu0 %v816
  %v851 = vpop.f32.mrb[0].mxu0
  %v852 = vadd.f32 0.0, %v851
  %v853 = vpop.f32.mrb[0].mxu0
  %v854 = vadd.f32 0.0, %v853
  %v855 = vpop.f32.mrb[0].mxu0
  %v856 = vpop.f32.mrb[0].mxu0
  %857 = vdwg.mxu0
  %858 = vmatprep.subr.bf16.mxu0 %v156
  %859 = vmatpush1.bf16.msra.mxu0 %v155
  %860 = vmatprep.subr.bf16.mxu0 %v160
  %861 = vmatpush1.bf16.msra.mxu0 %v159
  %862 = vmatprep.subr.bf16.mxu0 %v164
  %863 = vmatpush1.bf16.msra.mxu0 %v163
  %864 = vmatprep.subr.bf16.mxu0 %v168
  %865 = vmatpush1.bf16.msra.mxu0 %v167
  %866 = vmatprep.subr.bf16.mxu0 %v172
  %867 = vmatpush1.bf16.msra.mxu0 %v171
  %868 = vmatprep.subr.bf16.mxu0 %v176
  %869 = vmatpush1.bf16.msra.mxu0 %v175
  %870 = vmatprep.subr.bf16.mxu0 %v180
  %871 = vmatpush1.bf16.msra.mxu0 %v179
  %872 = vmatprep.subr.bf16.mxu0 %v184
  %873 = vmatpush1.bf16.msra.mxu0 %v183
  %874 = vmatprep.subr.bf16.mxu0 0
  %875 = vmatpush1.bf16.msra.mxu0 0
  %876 = vmatprep.subr.bf16.mxu0 0
  %877 = vmatpush1.bf16.msra.mxu0 0
  %878 = vmatprep.subr.bf16.mxu0 0
  %879 = vmatpush1.bf16.msra.mxu0 0
  %880 = vmatprep.subr.bf16.mxu0 0
  %881 = vmatpush1.bf16.msra.mxu0 0
  %882 = vmatprep.subr.bf16.mxu0 0
  %883 = vmatpush1.bf16.msra.mxu0 0
  %884 = vmatprep.subr.bf16.mxu0 0
  %885 = vmatpush1.bf16.msra.mxu0 0
  %886 = vmatprep.subr.bf16.mxu0 0
  %887 = vmatpush1.bf16.msra.mxu0 0
  %888 = vmatprep.subr.bf16.mxu0 0
  %889 = vmatpush1.bf16.msra.mxu0 0
  %890 = vmatprep.mubr.bf16.mxu0 0
  %891 = vmatmul.mubr.bf16.gmra.mrb[0].mxu0 %v816
  %v892 = vpop.f32.mrb[0].mxu0
  %v893 = vadd.f32 0.0, %v892
  %v894 = vpop.f32.mrb[0].mxu0
  %v895 = vadd.f32 0.0, %v894
  %v896 = vpop.f32.mrb[0].mxu0
  %v897 = vpop.f32.mrb[0].mxu0
  %898 = vdwg.mxu0
  %v899 = vadd.f32 %v812, %v852
  %v900 = vadd.f32 %v813, %v854
  %v901 = vadd.f32 %v814, %v893
  %v902 = vadd.f32 %v815, %v895
  %v903 = vxor.u32 %v899, 2147483648
  %v904 = vmul.f32 %v903, 1.442695
  %v905 = vpow.pop %v904
  %v906 = vadd.f32 %v905, 1.0
  %v907 = vrcp.pop %v906
  %v908 = vmul.f32 1.0, %v907
  %v909 = vxor.u32 %v900, 2147483648
  %v910 = vmul.f32 %v909, 1.442695
  %v911 = vpow.pop %v910
  %v912 = vadd.f32 %v911, 1.0
  %v913 = vrcp.pop %v912
  %v914 = vmul.f32 1.0, %v913
  %v915 = vxor.u32 %v901, 2147483648
  %v916 = vmul.f32 %v915, 1.442695
  %v917 = vpow.pop %v916
  %v918 = vadd.f32 %v917, 1.0
  %v919 = vrcp.pop %v918
  %v920 = vmul.f32 1.0, %v919
  %v921 = vtanh.pop %v902
  %v922 = vmul.f32 %v908, %v810
  %v923 = vmul.f32 %v914, %v921
  %v924 = vadd.f32 %v922, %v923
  %v925 = vtanh.pop %v924
  %v926 = vmul.f32 %v920, %v925
  %927 = vst [vmem:[#allocation3] sm:$0xff] %v924
  %928 = vst [vmem:[#allocation2] sm:$0xff] %v926
  %v929 = vld [vmem:[#allocation2] sm:$0xff]
  %v930 = vld [vmem:[#allocation3] sm:$0xff]
  %s931 = scalar_lea.vmem %s0, 192
  %v932 = vld [vmem:[%s931] sm:$0xff]
  %v933 = vld [vmem:[%s931 + $0x8] sm:$0xff]
  %v934 = vld [vmem:[%s931 + $0x10] sm:$0xff]
  %v935 = vld [vmem:[%s931 + $0x18] sm:$0xff]
  %v936 = vpack.c.bf16 %v929, %v929
  %937 = vmatprep.subr.bf16.mxu0 %v154
  %938 = vmatpush1.bf16.msra.mxu0 %v153
  %939 = vmatprep.subr.bf16.mxu0 %v158
  %940 = vmatpush1.bf16.msra.mxu0 %v157
  %941 = vmatprep.subr.bf16.mxu0 %v162
  %942 = vmatpush1.bf16.msra.mxu0 %v161
  %943 = vmatprep.subr.bf16.mxu0 %v166
  %944 = vmatpush1.bf16.msra.mxu0 %v165
  %945 = vmatprep.subr.bf16.mxu0 %v170
  %946 = vmatpush1.bf16.msra.mxu0 %v169
  %947 = vmatprep.subr.bf16.mxu0 %v174
  %948 = vmatpush1.bf16.msra.mxu0 %v173
  %949 = vmatprep.subr.bf16.mxu0 %v178
  %950 = vmatpush1.bf16.msra.mxu0 %v177
  %951 = vmatprep.subr.bf16.mxu0 %v182
  %952 = vmatpush1.bf16.msra.mxu0 %v181
  %953 = vmatprep.subr.bf16.mxu0 0
  %954 = vmatpush1.bf16.msra.mxu0 0
  %955 = vmatprep.subr.bf16.mxu0 0
  %956 = vmatpush1.bf16.msra.mxu0 0
  %957 = vmatprep.subr.bf16.mxu0 0
  %958 = vmatpush1.bf16.msra.mxu0 0
  %959 = vmatprep.subr.bf16.mxu0 0
  %960 = vmatpush1.bf16.msra.mxu0 0
  %961 = vmatprep.subr.bf16.mxu0 0
  %962 = vmatpush1.bf16.msra.mxu0 0
  %963 = vmatprep.subr.bf16.mxu0 0
  %964 = vmatpush1.bf16.msra.mxu0 0
  %965 = vmatprep.subr.bf16.mxu0 0
  %966 = vmatpush1.bf16.msra.mxu0 0
  %967 = vmatprep.subr.bf16.mxu0 0
  %968 = vmatpush1.bf16.msra.mxu0 0
  %969 = vmatprep.mubr.bf16.mxu0 0
  %970 = vmatmul.mubr.bf16.gmra.mrb[0].mxu0 %v936
  %v971 = vpop.f32.mrb[0].mxu0
  %v972 = vadd.f32 0.0, %v971
  %v973 = vpop.f32.mrb[0].mxu0
  %v974 = vadd.f32 0.0, %v973
  %v975 = vpop.f32.mrb[0].mxu0
  %v976 = vpop.f32.mrb[0].mxu0
  %977 = vdwg.mxu0
  %978 = vmatprep.subr.bf16.mxu0 %v156
  %979 = vmatpush1.bf16.msra.mxu0 %v155
  %980 = vmatprep.subr.bf16.mxu0 %v160
  %981 = vmatpush1.bf16.msra.mxu0 %v159
  %982 = vmatprep.subr.bf16.mxu0 %v164
  %983 = vmatpush1.bf16.msra.mxu0 %v163
  %984 = vmatprep.subr.bf16.mxu0 %v168
  %985 = vmatpush1.bf16.msra.mxu0 %v167
  %986 = vmatprep.subr.bf16.mxu0 %v172
  %987 = vmatpush1.bf16.msra.mxu0 %v171
  %988 = vmatprep.subr.bf16.mxu0 %v176
  %989 = vmatpush1.bf16.msra.mxu0 %v175
  %990 = vmatprep.subr.bf16.mxu0 %v180
  %991 = vmatpush1.bf16.msra.mxu0 %v179
  %992 = vmatprep.subr.bf16.mxu0 %v184
  %993 = vmatpush1.bf16.msra.mxu0 %v183
  %994 = vmatprep.subr.bf16.mxu0 0
  %995 = vmatpush1.bf16.msra.mxu0 0
  %996 = vmatprep.subr.bf16.mxu0 0
  %997 = vmatpush1.bf16.msra.mxu0 0
  %998 = vmatprep.subr.bf16.mxu0 0
  %999 = vmatpush1.bf16.msra.mxu0 0
  %1000 = vmatprep.subr.bf16.mxu0 0
  %1001 = vmatpush1.bf16.msra.mxu0 0
  %1002 = vmatprep.subr.bf16.mxu0 0
  %1003 = vmatpush1.bf16.msra.mxu0 0
  %1004 = vmatprep.subr.bf16.mxu0 0
  %1005 = vmatpush1.bf16.msra.mxu0 0
  %1006 = vmatprep.subr.bf16.mxu0 0
  %1007 = vmatpush1.bf16.msra.mxu0 0
  %1008 = vmatprep.subr.bf16.mxu0 0
  %1009 = vmatpush1.bf16.msra.mxu0 0
  %1010 = vmatprep.mubr.bf16.mxu0 0
  %1011 = vmatmul.mubr.bf16.gmra.mrb[0].mxu0 %v936
  %v1012 = vpop.f32.mrb[0].mxu0
  %v1013 = vadd.f32 0.0, %v1012
  %v1014 = vpop.f32.mrb[0].mxu0
  %v1015 = vadd.f32 0.0, %v1014
  %v1016 = vpop.f32.mrb[0].mxu0
  %v1017 = vpop.f32.mrb[0].mxu0
  %1018 = vdwg.mxu0
  %v1019 = vadd.f32 %v932, %v972
  %v1020 = vadd.f32 %v933, %v974
  %v1021 = vadd.f32 %v934, %v1013
  %v1022 = vadd.f32 %v935, %v1015
  %v1023 = vxor.u32 %v1019, 2147483648
  %v1024 = vmul.f32 %v1023, 1.442695
  %v1025 = vpow.pop %v1024
  %v1026 = vadd.f32 %v1025, 1.0
  %v1027 = vrcp.pop %v1026
  %v1028 = vmul.f32 1.0, %v1027
  %v1029 = vxor.u32 %v1020, 2147483648
  %v1030 = vmul.f32 %v1029, 1.442695
  %v1031 = vpow.pop %v1030
  %v1032 = vadd.f32 %v1031, 1.0
  %v1033 = vrcp.pop %v1032
  %v1034 = vmul.f32 1.0, %v1033
  %v1035 = vxor.u32 %v1021, 2147483648
  %v1036 = vmul.f32 %v1035, 1.442695
  %v1037 = vpow.pop %v1036
  %v1038 = vadd.f32 %v1037, 1.0
  %v1039 = vrcp.pop %v1038
  %v1040 = vmul.f32 1.0, %v1039
  %v1041 = vtanh.pop %v1022
  %v1042 = vmul.f32 %v1028, %v930
  %v1043 = vmul.f32 %v1034, %v1041
  %v1044 = vadd.f32 %v1042, %v1043
  %v1045 = vtanh.pop %v1044
  %v1046 = vmul.f32 %v1040, %v1045
  %1047 = vst [vmem:[#allocation3] sm:$0xff] %v1044
  %1048 = vst [vmem:[#allocation2] sm:$0xff] %v1046
  %v1049 = vld [vmem:[#allocation2] sm:$0xff]
  %v1050 = vld [vmem:[#allocation3] sm:$0xff]
  %s1051 = scalar_lea.vmem %s0, 224
  %v1052 = vld [vmem:[%s1051] sm:$0xff]
  %v1053 = vld [vmem:[%s1051 + $0x8] sm:$0xff]
  %v1054 = vld [vmem:[%s1051 + $0x10] sm:$0xff]
  %v1055 = vld [vmem:[%s1051 + $0x18] sm:$0xff]
  %v1056 = vpack.c.bf16 %v1049, %v1049
  %1057 = vmatprep.subr.bf16.mxu0 %v154
  %1058 = vmatpush1.bf16.msra.mxu0 %v153
  %1059 = vmatprep.subr.bf16.mxu0 %v158
  %1060 = vmatpush1.bf16.msra.mxu0 %v157
  %1061 = vmatprep.subr.bf16.mxu0 %v162
  %1062 = vmatpush1.bf16.msra.mxu0 %v161
  %1063 = vmatprep.subr.bf16.mxu0 %v166
  %1064 = vmatpush1.bf16.msra.mxu0 %v165
  %1065 = vmatprep.subr.bf16.mxu0 %v170
  %1066 = vmatpush1.bf16.msra.mxu0 %v169
  %1067 = vmatprep.subr.bf16.mxu0 %v174
  %1068 = vmatpush1.bf16.msra.mxu0 %v173
  %1069 = vmatprep.subr.bf16.mxu0 %v178
  %1070 = vmatpush1.bf16.msra.mxu0 %v177
  %1071 = vmatprep.subr.bf16.mxu0 %v182
  %1072 = vmatpush1.bf16.msra.mxu0 %v181
  %1073 = vmatprep.subr.bf16.mxu0 0
  %1074 = vmatpush1.bf16.msra.mxu0 0
  %1075 = vmatprep.subr.bf16.mxu0 0
  %1076 = vmatpush1.bf16.msra.mxu0 0
  %1077 = vmatprep.subr.bf16.mxu0 0
  %1078 = vmatpush1.bf16.msra.mxu0 0
  %1079 = vmatprep.subr.bf16.mxu0 0
  %1080 = vmatpush1.bf16.msra.mxu0 0
  %1081 = vmatprep.subr.bf16.mxu0 0
  %1082 = vmatpush1.bf16.msra.mxu0 0
  %1083 = vmatprep.subr.bf16.mxu0 0
  %1084 = vmatpush1.bf16.msra.mxu0 0
  %1085 = vmatprep.subr.bf16.mxu0 0
  %1086 = vmatpush1.bf16.msra.mxu0 0
  %1087 = vmatprep.subr.bf16.mxu0 0
  %1088 = vmatpush1.bf16.msra.mxu0 0
  %1089 = vmatprep.mubr.bf16.mxu0 0
  %1090 = vmatmul.mubr.bf16.gmra.mrb[0].mxu0 %v1056
  %v1091 = vpop.f32.mrb[0].mxu0
  %v1092 = vadd.f32 0.0, %v1091
  %v1093 = vpop.f32.mrb[0].mxu0
  %v1094 = vadd.f32 0.0, %v1093
  %v1095 = vpop.f32.mrb[0].mxu0
  %v1096 = vpop.f32.mrb[0].mxu0
  %1097 = vdwg.mxu0
  %1098 = vmatprep.subr.bf16.mxu0 %v156
  %1099 = vmatpush1.bf16.msra.mxu0 %v155
  %1100 = vmatprep.subr.bf16.mxu0 %v160
  %1101 = vmatpush1.bf16.msra.mxu0 %v159
  %1102 = vmatprep.subr.bf16.mxu0 %v164
  %1103 = vmatpush1.bf16.msra.mxu0 %v163
  %1104 = vmatprep.subr.bf16.mxu0 %v168
  %1105 = vmatpush1.bf16.msra.mxu0 %v167
  %1106 = vmatprep.subr.bf16.mxu0 %v172
  %1107 = vmatpush1.bf16.msra.mxu0 %v171
  %1108 = vmatprep.subr.bf16.mxu0 %v176
  %1109 = vmatpush1.bf16.msra.mxu0 %v175
  %1110 = vmatprep.subr.bf16.mxu0 %v180
  %1111 = vmatpush1.bf16.msra.mxu0 %v179
  %1112 = vmatprep.subr.bf16.mxu0 %v184
  %1113 = vmatpush1.bf16.msra.mxu0 %v183
  %1114 = vmatprep.subr.bf16.mxu0 0
  %1115 = vmatpush1.bf16.msra.mxu0 0
  %1116 = vmatprep.subr.bf16.mxu0 0
  %1117 = vmatpush1.bf16.msra.mxu0 0
  %1118 = vmatprep.subr.bf16.mxu0 0
  %1119 = vmatpush1.bf16.msra.mxu0 0
  %1120 = vmatprep.subr.bf16.mxu0 0
  %1121 = vmatpush1.bf16.msra.mxu0 0
  %1122 = vmatprep.subr.bf16.mxu0 0
  %1123 = vmatpush1.bf16.msra.mxu0 0
  %1124 = vmatprep.subr.bf16.mxu0 0
  %1125 = vmatpush1.bf16.msra.mxu0 0
  %1126 = vmatprep.subr.bf16.mxu0 0
  %1127 = vmatpush1.bf16.msra.mxu0 0
  %1128 = vmatprep.subr.bf16.mxu0 0
  %1129 = vmatpush1.bf16.msra.mxu0 0
  %1130 = vmatprep.mubr.bf16.mxu0 0
  %1131 = vmatmul.mubr.bf16.gmra.mrb[0].mxu0 %v1056
  %v1132 = vpop.f32.mrb[0].mxu0
  %v1133 = vadd.f32 0.0, %v1132
  %v1134 = vpop.f32.mrb[0].mxu0
  %v1135 = vadd.f32 0.0, %v1134
  %v1136 = vpop.f32.mrb[0].mxu0
  %v1137 = vpop.f32.mrb[0].mxu0
  %1138 = vdwg.mxu0
  %v1139 = vadd.f32 %v1052, %v1092
  %v1140 = vadd.f32 %v1053, %v1094
  %v1141 = vadd.f32 %v1054, %v1133
  %v1142 = vadd.f32 %v1055, %v1135
  %v1143 = vxor.u32 %v1139, 2147483648
  %v1144 = vmul.f32 %v1143, 1.442695
  %v1145 = vpow.pop %v1144
  %v1146 = vadd.f32 %v1145, 1.0
  %v1147 = vrcp.pop %v1146
  %v1148 = vmul.f32 1.0, %v1147
  %v1149 = vxor.u32 %v1140, 2147483648
  %v1150 = vmul.f32 %v1149, 1.442695
  %v1151 = vpow.pop %v1150
  %v1152 = vadd.f32 %v1151, 1.0
  %v1153 = vrcp.pop %v1152
  %v1154 = vmul.f32 1.0, %v1153
  %v1155 = vxor.u32 %v1141, 2147483648
  %v1156 = vmul.f32 %v1155, 1.442695
  %v1157 = vpow.pop %v1156
  %v1158 = vadd.f32 %v1157, 1.0
  %v1159 = vrcp.pop %v1158
  %v1160 = vmul.f32 1.0, %v1159
  %v1161 = vtanh.pop %v1142
  %v1162 = vmul.f32 %v1148, %v1050
  %v1163 = vmul.f32 %v1154, %v1161
  %v1164 = vadd.f32 %v1162, %v1163
  %v1165 = vtanh.pop %v1164
  %v1166 = vmul.f32 %v1160, %v1165
  %1167 = vst [vmem:[#allocation3] sm:$0xff] %v1164
  %1168 = vst [vmem:[#allocation2] sm:$0xff] %v1166
  // Predicated region
  $region14: #{lstm_forward.3} parent=0 // pred_check
    %p1169 = pneg %p12
  $region15: #{lstm_forward.3} parent=0 // pred_check_branch
    %1171 = sbr.rel (%p1169) target = $region17
  $region16: #{lstm_forward.3} parent=0 // pred_region
    %v1172 = vld [vmem:[#allocation2] sm:$0xff]
    %1173 = vst [vmem:[%s2] sm:$0xff] %v1172
  $region17: #{lstm_forward.3} parent=0 // pred_fallthru
    _
  // Predicated region
  $region18: #{lstm_forward.3} parent=0 // pred_check
    _
  $region19: #{lstm_forward.3} parent=0 // pred_check_branch
    %1175 = sbr.rel (0) target = $region21
  $region20: #{lstm_forward.3} parent=0 // pred_region
    _
  $region21: #{lstm_forward.3} parent=0 // pred_fallthru
    _
  // Predicated region
  $region22: #{lstm_forward.3} parent=0 // pred_check
    _
  $region23: #{lstm_forward.3} parent=0 // pred_check_branch
    %1177 = sbr.rel (0) target = $region25
  $region24: #{lstm_forward.3} parent=0 // pred_region
    _
  $region25: #{lstm_forward.3} parent=0 // pred_fallthru
    _

</llo_original>
